<compile_context>
chip_gen: v7x
topology: tpu7x:2x2x1
jax: 0.10.0
libtpu: 0.0.40
codegen_flags: <defaults>
</compile_context>

<pallas_src>
import functools

import jax
import jax.numpy as jnp
import numpy as np
from jax import lax
from jax.experimental import pallas as pl
from jax.experimental.pallas import tpu as pltpu


def _lstm_kernel(tok_ref, emb_ref, wih_ref, whh_ref, b_ref, wfc_ref, bfc_ref,
                 out_ref, hT_ref, cT_ref, xw_sc, hseq_sc,
                 *, seq_len, b_pad, hidden, vocab):
    """Single-invocation LSTM forward.

    tok_ref : (T*Bp, 1)   int32 token ids, time-major, batch padded to Bp
    emb_ref : (V, H)      embedding table
    wih_ref : (H, 4H)     input->gates weight (gate order i,f,g,o like PyTorch)
    whh_ref : (H, 4H)     hidden->gates weight
    b_ref   : (1, 4H)     combined bias (b_ih + b_hh)
    wfc_ref : (H, O)      output projection weight
    bfc_ref : (1, O)      output projection bias
    out_ref : (T*Bp, O)   per-step logits
    hT_ref  : (Bp, H)     final hidden state
    cT_ref  : (Bp, H)     final cell state
    xw_sc   : (T*Bp, 4H)  VMEM scratch: precomputed input projections (+bias)
    hseq_sc : (T*Bp, H)   VMEM scratch: hidden state sequence
    """
    T, Bp, H, V = seq_len, b_pad, hidden, vocab

    # --- Fused embedding + input projection, hoisted out of the recurrence ---
    # onehot @ (E @ W_ih + b) == take(E, ids) @ W_ih + b   (one 1 per onehot row)
    eproj = (jnp.dot(emb_ref[...], wih_ref[...],
                     preferred_element_type=jnp.float32)
             + b_ref[...])                                            # (V, 4H)
    ids = tok_ref[...]                                                # (T*Bp, 1)
    lanes = lax.broadcasted_iota(jnp.int32, (T * Bp, V), 1)
    onehot = (lanes == ids).astype(jnp.float32)                       # (T*Bp, V)
    xw_sc[...] = jnp.dot(onehot, eproj, preferred_element_type=jnp.float32)

    whh = whh_ref[...]  # (H, 4H) stays resident for the whole recurrence

    def step(t, carry):
        h, c = carry
        row = pl.multiple_of(t * Bp, Bp)
        # Only the recurrent matmul remains on the serial per-step path.
        gates = xw_sc[pl.ds(row, Bp), :] + jnp.dot(
            h, whh, preferred_element_type=jnp.float32)               # (Bp, 4H)

        i = jax.nn.sigmoid(gates[:, 0 * H:1 * H])
        f = jax.nn.sigmoid(gates[:, 1 * H:2 * H])
        g = jnp.tanh(gates[:, 2 * H:3 * H])
        o = jax.nn.sigmoid(gates[:, 3 * H:4 * H])

        c_new = f * c + i * g
        h_new = o * jnp.tanh(c_new)

        hseq_sc[pl.ds(row, Bp), :] = h_new
        return h_new, c_new

    zeros = jnp.zeros((Bp, H), jnp.float32)
    h_T, c_T = lax.fori_loop(0, T, step, (zeros, zeros), unroll=True)

    hT_ref[...] = h_T
    cT_ref[...] = c_T

    # Hoisted FC: one (T*Bp, H) @ (H, O) matmul instead of T tiny ones.
    out_ref[...] = (
        jnp.dot(hseq_sc[...], wfc_ref[...], preferred_element_type=jnp.float32)
        + bfc_ref[...]).astype(out_ref.dtype)


def lstm_model_forward(tokens, params):
    """tokens: int32 (B, T).  Returns (output (B,T,O), (h_n, c_n))."""
    emb_table = params["embedding"]                    # (V, H)
    B, T = tokens.shape
    V, H = emb_table.shape
    O = params["b_fc"].shape[-1]
    Bp = ((B + 7) // 8) * 8                            # pad batch to f32 sublanes

    # Tiny integer glue in the wrapper: time-major layout + one-time batch pad.
    tok = jnp.transpose(tokens.astype(jnp.int32), (1, 0))   # (T, B)
    tok = jnp.pad(tok, ((0, 0), (0, Bp - B)))                # (T, Bp), pad id = 0
    tok_flat = tok.reshape(T * Bp, 1)

    kernel = functools.partial(_lstm_kernel, seq_len=T, b_pad=Bp, hidden=H,
                               vocab=V)
    vmem = pl.BlockSpec(memory_space=pltpu.MemorySpace.VMEM)

    out_flat, h_T, c_T = pl.pallas_call(
        kernel,
        out_shape=(jax.ShapeDtypeStruct((T * Bp, O), jnp.float32),
                   jax.ShapeDtypeStruct((Bp, H), jnp.float32),
                   jax.ShapeDtypeStruct((Bp, H), jnp.float32)),
        in_specs=[vmem] * 7,
        out_specs=(vmem, vmem, vmem),
        scratch_shapes=[pltpu.VMEM((T * Bp, 4 * H), jnp.float32),
                        pltpu.VMEM((T * Bp, H), jnp.float32)],
    )(tok_flat, emb_table, params["w_ih"], params["w_hh"], params["b"],
      params["w_fc"], params["b_fc"])

    out = out_flat.reshape(T, Bp, O)[:, :B, :]         # drop padded batch rows
    output = jnp.transpose(out, (1, 0, 2))             # (B, T, O) batch_first
    hidden = (h_T[None, :B, :], c_T[None, :B, :])      # (num_layers=1, B, H)
    return output, hidden


def _reference_forward(tokens, params):
    """Pure-JAX reference (mirrors the PyTorch module) for a sanity check."""
    emb = jnp.take(params["embedding"], tokens, axis=0)          # (B, T, H)
    B, T, H = emb.shape
    wih, whh, b = params["w_ih"], params["w_hh"], params["b"]

    def step(carry, x_t):
        h, c = carry
        gates = x_t @ wih + h @ whh + b[0]
        i = jax.nn.sigmoid(gates[:, 0 * H:1 * H])
        f = jax.nn.sigmoid(gates[:, 1 * H:2 * H])
        g = jnp.tanh(gates[:, 2 * H:3 * H])
        o = jax.nn.sigmoid(gates[:, 3 * H:4 * H])
        c = f * c + i * g
        h = o * jnp.tanh(c)
        return (h, c), h

    x_tm = jnp.transpose(emb, (1, 0, 2))                          # (T, B, H)
    init = (jnp.zeros((B, H), jnp.float32), jnp.zeros((B, H), jnp.float32))
    (h_T, c_T), hseq = lax.scan(step, init, x_tm)
    out = jnp.einsum("tbh,ho->tbo", hseq, params["w_fc"]) + params["b_fc"][0]
    return jnp.transpose(out, (1, 0, 2)), (h_T[None], c_T[None])


def init_params(key, input_size, hidden_size, output_size):
    """Deterministic synthetic parameters (PyTorch-like uniform init)."""
    H, V, O = hidden_size, input_size, output_size
    k = 1.0 / jnp.sqrt(jnp.float32(H))
    keys = jax.random.split(key, 7)
    u = lambda kk, shape: jax.random.uniform(kk, shape, jnp.float32, -k, k)
    params = {
        "embedding": jax.random.normal(keys[0], (V, H), jnp.float32),
        # stored pre-transposed so the kernel does x @ W; gate order i,f,g,o
        "w_ih": u(keys[1], (H, 4 * H)),
        "w_hh": u(keys[2], (H, 4 * H)),
        # combined b_ih + b_hh
        "b": u(keys[3], (1, 4 * H)) + u(keys[4], (1, 4 * H)),
        "w_fc": u(keys[5], (H, O)),
        "b_fc": u(keys[6], (1, O)),
    }
    return params


if __name__ == "__main__":
    # Small shapes consistent with the module's forward:
    #   x: int token ids of shape (batch, seq)
    INPUT_SIZE = 16    # vocab size for the embedding
    HIDDEN_SIZE = 32
    OUTPUT_SIZE = 16
    BATCH = 2
    SEQ = 8

    key = jax.random.PRNGKey(0)
    k_tok, k_par = jax.random.split(key)
    tokens = jax.random.randint(k_tok, (BATCH, SEQ), 0, INPUT_SIZE, dtype=jnp.int32)
    params = init_params(k_par, INPUT_SIZE, HIDDEN_SIZE, OUTPUT_SIZE)

    output, (h_n, c_n) = lstm_model_forward(tokens, params)
    jax.block_until_ready((output, h_n, c_n))

    assert output.shape == (BATCH, SEQ, OUTPUT_SIZE)
    assert h_n.shape == (1, BATCH, HIDDEN_SIZE)
    assert c_n.shape == (1, BATCH, HIDDEN_SIZE)

    # Loose-tolerance sanity check against a pure-JAX reference (MXU precision
    # differs slightly from the XLA reference matmuls).
    ref_out, (ref_h, ref_c) = _reference_forward(tokens, params)
    jax.block_until_ready((ref_out, ref_h, ref_c))
    assert float(jnp.max(jnp.abs(output - ref_out))) < 5e-2
    assert float(jnp.max(jnp.abs(h_n - ref_h))) < 5e-2
    assert float(jnp.max(jnp.abs(c_n - ref_c))) < 5e-2

    print("KERNEL_OK")
</pallas_src>

<mosaic_0001>
module attributes {stable_mosaic.version = 11 : i64} {
  func.func @_lstm_kernel(%arg0: memref<64x1xi32, #tpu.memory_space<vmem>>, %arg1: memref<16x32xf32, #tpu.memory_space<vmem>>, %arg2: memref<32x128xf32, #tpu.memory_space<vmem>>, %arg3: memref<32x128xf32, #tpu.memory_space<vmem>>, %arg4: memref<1x128xf32, #tpu.memory_space<vmem>>, %arg5: memref<32x16xf32, #tpu.memory_space<vmem>>, %arg6: memref<1x16xf32, #tpu.memory_space<vmem>>, %arg7: memref<64x16xf32, #tpu.memory_space<vmem>>, %arg8: memref<8x32xf32, #tpu.memory_space<vmem>>, %arg9: memref<8x32xf32, #tpu.memory_space<vmem>>, %arg10: memref<64x128xf32, #tpu.memory_space<vmem>>, %arg11: memref<64x32xf32, #tpu.memory_space<vmem>>) attributes {dimension_semantics = [], scalar_prefetch = 0 : i64, scratch_operands = 2 : i64, tpu.core_type = #tpu.core_type<tc>} {
    %c0 = arith.constant 0 : index
    %c0_0 = arith.constant 0 : index
    %0 = vector.load %arg1[%c0, %c0_0] : memref<16x32xf32, #tpu.memory_space<vmem>>, vector<16x32xf32>
    %c0_1 = arith.constant 0 : index
    %c0_2 = arith.constant 0 : index
    %1 = vector.load %arg2[%c0_1, %c0_2] : memref<32x128xf32, #tpu.memory_space<vmem>>, vector<32x128xf32>
    %cst = arith.constant dense<0.000000e+00> : vector<16x128xf32>
    %2 = tpu.matmul %0, %1, %cst {dimension_numbers = #tpu.dot_dimension_numbers<[1], [0], [0], [1], [0, 0, 1, 1], [], []>} : vector<16x32xf32>, vector<32x128xf32>, vector<16x128xf32> -> vector<16x128xf32>
    %c0_3 = arith.constant 0 : index
    %c0_4 = arith.constant 0 : index
    %3 = vector.load %arg4[%c0_3, %c0_4] : memref<1x128xf32, #tpu.memory_space<vmem>>, vector<1x128xf32>
    %4 = vector.broadcast %3 : vector<1x128xf32> to vector<16x128xf32>
    %5 = arith.addf %2, %4 : vector<16x128xf32>
    %c0_5 = arith.constant 0 : index
    %c0_6 = arith.constant 0 : index
    %6 = vector.load %arg0[%c0_5, %c0_6] : memref<64x1xi32, #tpu.memory_space<vmem>>, vector<64x1xi32>
    %7 = tpu.iota {dimensions = array<i32: 1>} : vector<64x16xi32>
    %8 = vector.broadcast %6 : vector<64x1xi32> to vector<64x16xi32>
    %9 = arith.cmpi eq, %7, %8 : vector<64x16xi32>
    %10 = arith.extui %9 : vector<64x16xi1> to vector<64x16xi32>
    %11 = arith.sitofp %10 : vector<64x16xi32> to vector<64x16xf32>
    %cst_7 = arith.constant dense<0.000000e+00> : vector<64x128xf32>
    %12 = tpu.matmul %11, %5, %cst_7 {dimension_numbers = #tpu.dot_dimension_numbers<[1], [0], [0], [1], [0, 0, 1, 1], [], []>} : vector<64x16xf32>, vector<16x128xf32>, vector<64x128xf32> -> vector<64x128xf32>
    %c0_8 = arith.constant 0 : index
    %c0_9 = arith.constant 0 : index
    %13 = vector.load %arg10[%c0_8, %c0_9] : memref<64x128xf32, #tpu.memory_space<vmem>>, vector<64x128xf32>
    tpu.vector_store %arg10[%c0_8, %c0_9], %12 {strides = array<i32>} : memref<64x128xf32, #tpu.memory_space<vmem>>, vector<64x128xf32>,
    %c0_10 = arith.constant 0 : index
    %c0_11 = arith.constant 0 : index
    %14 = vector.load %arg3[%c0_10, %c0_11] : memref<32x128xf32, #tpu.memory_space<vmem>>, vector<32x128xf32>
    %cst_12 = arith.constant 0.000000e+00 : f32
    %15 = vector.broadcast %cst_12 : f32 to vector<8x32xf32>
    %c0_i32 = arith.constant 0 : i32
    %c8_i32 = arith.constant 8 : i32
    %16 = arith.muli %c0_i32, %c8_i32 : i32
    %17 = tpu.assume_multiple %16, 8 : i32
    %18 = arith.index_cast %17 : i32 to index
    %c0_13 = arith.constant 0 : index
    %19 = vector.load %arg10[%18, %c0_13] : memref<64x128xf32, #tpu.memory_space<vmem>>, vector<8x128xf32>
    %cst_14 = arith.constant dense<0.000000e+00> : vector<8x128xf32>
    %20 = tpu.matmul %15, %14, %cst_14 {dimension_numbers = #tpu.dot_dimension_numbers<[1], [0], [0], [1], [0, 0, 1, 1], [], []>} : vector<8x32xf32>, vector<32x128xf32>, vector<8x128xf32> -> vector<8x128xf32>
    %21 = arith.addf %19, %20 : vector<8x128xf32>
    %22 = vector.extract_strided_slice %21 {offsets = [0, 0], sizes = [8, 32], strides = [1, 1]} : vector<8x128xf32> to vector<8x32xf32>
    %23 = arith.negf %22 : vector<8x32xf32>
    %24 = math.exp %23 : vector<8x32xf32>
    %cst_15 = arith.constant 1.000000e+00 : f32
    %25 = vector.broadcast %cst_15 : f32 to vector<8x32xf32>
    %26 = arith.addf %25, %24 : vector<8x32xf32>
    %27 = arith.divf %25, %26 : vector<8x32xf32>
    %28 = vector.extract_strided_slice %21 {offsets = [0, 32], sizes = [8, 32], strides = [1, 1]} : vector<8x128xf32> to vector<8x32xf32>
    %29 = arith.negf %28 : vector<8x32xf32>
    %30 = math.exp %29 : vector<8x32xf32>
    %cst_16 = arith.constant 1.000000e+00 : f32
    %31 = vector.broadcast %cst_16 : f32 to vector<8x32xf32>
    %32 = arith.addf %31, %30 : vector<8x32xf32>
    %33 = arith.divf %31, %32 : vector<8x32xf32>
    %34 = vector.extract_strided_slice %21 {offsets = [0, 64], sizes = [8, 32], strides = [1, 1]} : vector<8x128xf32> to vector<8x32xf32>
    %35 = math.tanh %34 : vector<8x32xf32>
    %36 = vector.extract_strided_slice %21 {offsets = [0, 96], sizes = [8, 32], strides = [1, 1]} : vector<8x128xf32> to vector<8x32xf32>
    %37 = arith.negf %36 : vector<8x32xf32>
    %38 = math.exp %37 : vector<8x32xf32>
    %cst_17 = arith.constant 1.000000e+00 : f32
    %39 = vector.broadcast %cst_17 : f32 to vector<8x32xf32>
    %40 = arith.addf %39, %38 : vector<8x32xf32>
    %41 = arith.divf %39, %40 : vector<8x32xf32>
    %42 = arith.mulf %33, %15 : vector<8x32xf32>
    %43 = arith.mulf %27, %35 : vector<8x32xf32>
    %44 = arith.addf %42, %43 : vector<8x32xf32>
    %45 = math.tanh %44 : vector<8x32xf32>
    %46 = arith.mulf %41, %45 : vector<8x32xf32>
    %47 = arith.index_cast %17 : i32 to index
    %c0_18 = arith.constant 0 : index
    %48 = vector.load %arg11[%47, %c0_18] : memref<64x32xf32, #tpu.memory_space<vmem>>, vector<8x32xf32>
    tpu.vector_store %arg11[%47, %c0_18], %46 {strides = array<i32>} : memref<64x32xf32, #tpu.memory_space<vmem>>, vector<8x32xf32>,
    %c1_i32 = arith.constant 1 : i32
    %c8_i32_19 = arith.constant 8 : i32
    %49 = arith.muli %c1_i32, %c8_i32_19 : i32
    %50 = tpu.assume_multiple %49, 8 : i32
    %51 = arith.index_cast %50 : i32 to index
    %c0_20 = arith.constant 0 : index
    %52 = vector.load %arg10[%51, %c0_20] : memref<64x128xf32, #tpu.memory_space<vmem>>, vector<8x128xf32>
    %cst_21 = arith.constant dense<0.000000e+00> : vector<8x128xf32>
    %53 = tpu.matmul %46, %14, %cst_21 {dimension_numbers = #tpu.dot_dimension_numbers<[1], [0], [0], [1], [0, 0, 1, 1], [], []>} : vector<8x32xf32>, vector<32x128xf32>, vector<8x128xf32> -> vector<8x128xf32>
    %54 = arith.addf %52, %53 : vector<8x128xf32>
    %55 = vector.extract_strided_slice %54 {offsets = [0, 0], sizes = [8, 32], strides = [1, 1]} : vector<8x128xf32> to vector<8x32xf32>
    %56 = arith.negf %55 : vector<8x32xf32>
    %57 = math.exp %56 : vector<8x32xf32>
    %cst_22 = arith.constant 1.000000e+00 : f32
    %58 = vector.broadcast %cst_22 : f32 to vector<8x32xf32>
    %59 = arith.addf %58, %57 : vector<8x32xf32>
    %60 = arith.divf %58, %59 : vector<8x32xf32>
    %61 = vector.extract_strided_slice %54 {offsets = [0, 32], sizes = [8, 32], strides = [1, 1]} : vector<8x128xf32> to vector<8x32xf32>
    %62 = arith.negf %61 : vector<8x32xf32>
    %63 = math.exp %62 : vector<8x32xf32>
    %cst_23 = arith.constant 1.000000e+00 : f32
    %64 = vector.broadcast %cst_23 : f32 to vector<8x32xf32>
    %65 = arith.addf %64, %63 : vector<8x32xf32>
    %66 = arith.divf %64, %65 : vector<8x32xf32>
    %67 = vector.extract_strided_slice %54 {offsets = [0, 64], sizes = [8, 32], strides = [1, 1]} : vector<8x128xf32> to vector<8x32xf32>
    %68 = math.tanh %67 : vector<8x32xf32>
    %69 = vector.extract_strided_slice %54 {offsets = [0, 96], sizes = [8, 32], strides = [1, 1]} : vector<8x128xf32> to vector<8x32xf32>
    %70 = arith.negf %69 : vector<8x32xf32>
    %71 = math.exp %70 : vector<8x32xf32>
    %cst_24 = arith.constant 1.000000e+00 : f32
    %72 = vector.broadcast %cst_24 : f32 to vector<8x32xf32>
    %73 = arith.addf %72, %71 : vector<8x32xf32>
    %74 = arith.divf %72, %73 : vector<8x32xf32>
    %75 = arith.mulf %66, %44 : vector<8x32xf32>
    %76 = arith.mulf %60, %68 : vector<8x32xf32>
    %77 = arith.addf %75, %76 : vector<8x32xf32>
    %78 = math.tanh %77 : vector<8x32xf32>
    %79 = arith.mulf %74, %78 : vector<8x32xf32>
    %80 = arith.index_cast %50 : i32 to index
    %c0_25 = arith.constant 0 : index
    %81 = vector.load %arg11[%80, %c0_25] : memref<64x32xf32, #tpu.memory_space<vmem>>, vector<8x32xf32>
    tpu.vector_store %arg11[%80, %c0_25], %79 {strides = array<i32>} : memref<64x32xf32, #tpu.memory_space<vmem>>, vector<8x32xf32>,
    %c2_i32 = arith.constant 2 : i32
    %c8_i32_26 = arith.constant 8 : i32
    %82 = arith.muli %c2_i32, %c8_i32_26 : i32
    %83 = tpu.assume_multiple %82, 8 : i32
    %84 = arith.index_cast %83 : i32 to index
    %c0_27 = arith.constant 0 : index
    %85 = vector.load %arg10[%84, %c0_27] : memref<64x128xf32, #tpu.memory_space<vmem>>, vector<8x128xf32>
    %cst_28 = arith.constant dense<0.000000e+00> : vector<8x128xf32>
    %86 = tpu.matmul %79, %14, %cst_28 {dimension_numbers = #tpu.dot_dimension_numbers<[1], [0], [0], [1], [0, 0, 1, 1], [], []>} : vector<8x32xf32>, vector<32x128xf32>, vector<8x128xf32> -> vector<8x128xf32>
    %87 = arith.addf %85, %86 : vector<8x128xf32>
    %88 = vector.extract_strided_slice %87 {offsets = [0, 0], sizes = [8, 32], strides = [1, 1]} : vector<8x128xf32> to vector<8x32xf32>
    %89 = arith.negf %88 : vector<8x32xf32>
    %90 = math.exp %89 : vector<8x32xf32>
    %cst_29 = arith.constant 1.000000e+00 : f32
    %91 = vector.broadcast %cst_29 : f32 to vector<8x32xf32>
    %92 = arith.addf %91, %90 : vector<8x32xf32>
    %93 = arith.divf %91, %92 : vector<8x32xf32>
    %94 = vector.extract_strided_slice %87 {offsets = [0, 32], sizes = [8, 32], strides = [1, 1]} : vector<8x128xf32> to vector<8x32xf32>
    %95 = arith.negf %94 : vector<8x32xf32>
    %96 = math.exp %95 : vector<8x32xf32>
    %cst_30 = arith.constant 1.000000e+00 : f32
    %97 = vector.broadcast %cst_30 : f32 to vector<8x32xf32>
    %98 = arith.addf %97, %96 : vector<8x32xf32>
    %99 = arith.divf %97, %98 : vector<8x32xf32>
    %100 = vector.extract_strided_slice %87 {offsets = [0, 64], sizes = [8, 32], strides = [1, 1]} : vector<8x128xf32> to vector<8x32xf32>
    %101 = math.tanh %100 : vector<8x32xf32>
    %102 = vector.extract_strided_slice %87 {offsets = [0, 96], sizes = [8, 32], strides = [1, 1]} : vector<8x128xf32> to vector<8x32xf32>
    %103 = arith.negf %102 : vector<8x32xf32>
    %104 = math.exp %103 : vector<8x32xf32>
    %cst_31 = arith.constant 1.000000e+00 : f32
    %105 = vector.broadcast %cst_31 : f32 to vector<8x32xf32>
    %106 = arith.addf %105, %104 : vector<8x32xf32>
    %107 = arith.divf %105, %106 : vector<8x32xf32>
    %108 = arith.mulf %99, %77 : vector<8x32xf32>
    %109 = arith.mulf %93, %101 : vector<8x32xf32>
    %110 = arith.addf %108, %109 : vector<8x32xf32>
    %111 = math.tanh %110 : vector<8x32xf32>
    %112 = arith.mulf %107, %111 : vector<8x32xf32>
    %113 = arith.index_cast %83 : i32 to index
    %c0_32 = arith.constant 0 : index
    %114 = vector.load %arg11[%113, %c0_32] : memref<64x32xf32, #tpu.memory_space<vmem>>, vector<8x32xf32>
    tpu.vector_store %arg11[%113, %c0_32], %112 {strides = array<i32>} : memref<64x32xf32, #tpu.memory_space<vmem>>, vector<8x32xf32>,
    %c3_i32 = arith.constant 3 : i32
    %c8_i32_33 = arith.constant 8 : i32
    %115 = arith.muli %c3_i32, %c8_i32_33 : i32
    %116 = tpu.assume_multiple %115, 8 : i32
    %117 = arith.index_cast %116 : i32 to index
    %c0_34 = arith.constant 0 : index
    %118 = vector.load %arg10[%117, %c0_34] : memref<64x128xf32, #tpu.memory_space<vmem>>, vector<8x128xf32>
    %cst_35 = arith.constant dense<0.000000e+00> : vector<8x128xf32>
    %119 = tpu.matmul %112, %14, %cst_35 {dimension_numbers = #tpu.dot_dimension_numbers<[1], [0], [0], [1], [0, 0, 1, 1], [], []>} : vector<8x32xf32>, vector<32x128xf32>, vector<8x128xf32> -> vector<8x128xf32>
    %120 = arith.addf %118, %119 : vector<8x128xf32>
    %121 = vector.extract_strided_slice %120 {offsets = [0, 0], sizes = [8, 32], strides = [1, 1]} : vector<8x128xf32> to vector<8x32xf32>
    %122 = arith.negf %121 : vector<8x32xf32>
    %123 = math.exp %122 : vector<8x32xf32>
    %cst_36 = arith.constant 1.000000e+00 : f32
    %124 = vector.broadcast %cst_36 : f32 to vector<8x32xf32>
    %125 = arith.addf %124, %123 : vector<8x32xf32>
    %126 = arith.divf %124, %125 : vector<8x32xf32>
    %127 = vector.extract_strided_slice %120 {offsets = [0, 32], sizes = [8, 32], strides = [1, 1]} : vector<8x128xf32> to vector<8x32xf32>
    %128 = arith.negf %127 : vector<8x32xf32>
    %129 = math.exp %128 : vector<8x32xf32>
    %cst_37 = arith.constant 1.000000e+00 : f32
    %130 = vector.broadcast %cst_37 : f32 to vector<8x32xf32>
    %131 = arith.addf %130, %129 : vector<8x32xf32>
    %132 = arith.divf %130, %131 : vector<8x32xf32>
    %133 = vector.extract_strided_slice %120 {offsets = [0, 64], sizes = [8, 32], strides = [1, 1]} : vector<8x128xf32> to vector<8x32xf32>
    %134 = math.tanh %133 : vector<8x32xf32>
    %135 = vector.extract_strided_slice %120 {offsets = [0, 96], sizes = [8, 32], strides = [1, 1]} : vector<8x128xf32> to vector<8x32xf32>
    %136 = arith.negf %135 : vector<8x32xf32>
    %137 = math.exp %136 : vector<8x32xf32>
    %cst_38 = arith.constant 1.000000e+00 : f32
    %138 = vector.broadcast %cst_38 : f32 to vector<8x32xf32>
    %139 = arith.addf %138, %137 : vector<8x32xf32>
    %140 = arith.divf %138, %139 : vector<8x32xf32>
    %141 = arith.mulf %132, %110 : vector<8x32xf32>
    %142 = arith.mulf %126, %134 : vector<8x32xf32>
    %143 = arith.addf %141, %142 : vector<8x32xf32>
    %144 = math.tanh %143 : vector<8x32xf32>
    %145 = arith.mulf %140, %144 : vector<8x32xf32>
    %146 = arith.index_cast %116 : i32 to index
    %c0_39 = arith.constant 0 : index
    %147 = vector.load %arg11[%146, %c0_39] : memref<64x32xf32, #tpu.memory_space<vmem>>, vector<8x32xf32>
    tpu.vector_store %arg11[%146, %c0_39], %145 {strides = array<i32>} : memref<64x32xf32, #tpu.memory_space<vmem>>, vector<8x32xf32>,
    %c4_i32 = arith.constant 4 : i32
    %c8_i32_40 = arith.constant 8 : i32
    %148 = arith.muli %c4_i32, %c8_i32_40 : i32
    %149 = tpu.assume_multiple %148, 8 : i32
    %150 = arith.index_cast %149 : i32 to index
    %c0_41 = arith.constant 0 : index
    %151 = vector.load %arg10[%150, %c0_41] : memref<64x128xf32, #tpu.memory_space<vmem>>, vector<8x128xf32>
    %cst_42 = arith.constant dense<0.000000e+00> : vector<8x128xf32>
    %152 = tpu.matmul %145, %14, %cst_42 {dimension_numbers = #tpu.dot_dimension_numbers<[1], [0], [0], [1], [0, 0, 1, 1], [], []>} : vector<8x32xf32>, vector<32x128xf32>, vector<8x128xf32> -> vector<8x128xf32>
    %153 = arith.addf %151, %152 : vector<8x128xf32>
    %154 = vector.extract_strided_slice %153 {offsets = [0, 0], sizes = [8, 32], strides = [1, 1]} : vector<8x128xf32> to vector<8x32xf32>
    %155 = arith.negf %154 : vector<8x32xf32>
    %156 = math.exp %155 : vector<8x32xf32>
    %cst_43 = arith.constant 1.000000e+00 : f32
    %157 = vector.broadcast %cst_43 : f32 to vector<8x32xf32>
    %158 = arith.addf %157, %156 : vector<8x32xf32>
    %159 = arith.divf %157, %158 : vector<8x32xf32>
    %160 = vector.extract_strided_slice %153 {offsets = [0, 32], sizes = [8, 32], strides = [1, 1]} : vector<8x128xf32> to vector<8x32xf32>
    %161 = arith.negf %160 : vector<8x32xf32>
    %162 = math.exp %161 : vector<8x32xf32>
    %cst_44 = arith.constant 1.000000e+00 : f32
    %163 = vector.broadcast %cst_44 : f32 to vector<8x32xf32>
    %164 = arith.addf %163, %162 : vector<8x32xf32>
    %165 = arith.divf %163, %164 : vector<8x32xf32>
    %166 = vector.extract_strided_slice %153 {offsets = [0, 64], sizes = [8, 32], strides = [1, 1]} : vector<8x128xf32> to vector<8x32xf32>
    %167 = math.tanh %166 : vector<8x32xf32>
    %168 = vector.extract_strided_slice %153 {offsets = [0, 96], sizes = [8, 32], strides = [1, 1]} : vector<8x128xf32> to vector<8x32xf32>
    %169 = arith.negf %168 : vector<8x32xf32>
    %170 = math.exp %169 : vector<8x32xf32>
    %cst_45 = arith.constant 1.000000e+00 : f32
    %171 = vector.broadcast %cst_45 : f32 to vector<8x32xf32>
    %172 = arith.addf %171, %170 : vector<8x32xf32>
    %173 = arith.divf %171, %172 : vector<8x32xf32>
    %174 = arith.mulf %165, %143 : vector<8x32xf32>
    %175 = arith.mulf %159, %167 : vector<8x32xf32>
    %176 = arith.addf %174, %175 : vector<8x32xf32>
    %177 = math.tanh %176 : vector<8x32xf32>
    %178 = arith.mulf %173, %177 : vector<8x32xf32>
    %179 = arith.index_cast %149 : i32 to index
    %c0_46 = arith.constant 0 : index
    %180 = vector.load %arg11[%179, %c0_46] : memref<64x32xf32, #tpu.memory_space<vmem>>, vector<8x32xf32>
    tpu.vector_store %arg11[%179, %c0_46], %178 {strides = array<i32>} : memref<64x32xf32, #tpu.memory_space<vmem>>, vector<8x32xf32>,
    %c5_i32 = arith.constant 5 : i32
    %c8_i32_47 = arith.constant 8 : i32
    %181 = arith.muli %c5_i32, %c8_i32_47 : i32
    %182 = tpu.assume_multiple %181, 8 : i32
    %183 = arith.index_cast %182 : i32 to index
    %c0_48 = arith.constant 0 : index
    %184 = vector.load %arg10[%183, %c0_48] : memref<64x128xf32, #tpu.memory_space<vmem>>, vector<8x128xf32>
    %cst_49 = arith.constant dense<0.000000e+00> : vector<8x128xf32>
    %185 = tpu.matmul %178, %14, %cst_49 {dimension_numbers = #tpu.dot_dimension_numbers<[1], [0], [0], [1], [0, 0, 1, 1], [], []>} : vector<8x32xf32>, vector<32x128xf32>, vector<8x128xf32> -> vector<8x128xf32>
    %186 = arith.addf %184, %185 : vector<8x128xf32>
    %187 = vector.extract_strided_slice %186 {offsets = [0, 0], sizes = [8, 32], strides = [1, 1]} : vector<8x128xf32> to vector<8x32xf32>
    %188 = arith.negf %187 : vector<8x32xf32>
    %189 = math.exp %188 : vector<8x32xf32>
    %cst_50 = arith.constant 1.000000e+00 : f32
    %190 = vector.broadcast %cst_50 : f32 to vector<8x32xf32>
    %191 = arith.addf %190, %189 : vector<8x32xf32>
    %192 = arith.divf %190, %191 : vector<8x32xf32>
    %193 = vector.extract_strided_slice %186 {offsets = [0, 32], sizes = [8, 32], strides = [1, 1]} : vector<8x128xf32> to vector<8x32xf32>
    %194 = arith.negf %193 : vector<8x32xf32>
    %195 = math.exp %194 : vector<8x32xf32>
    %cst_51 = arith.constant 1.000000e+00 : f32
    %196 = vector.broadcast %cst_51 : f32 to vector<8x32xf32>
    %197 = arith.addf %196, %195 : vector<8x32xf32>
    %198 = arith.divf %196, %197 : vector<8x32xf32>
    %199 = vector.extract_strided_slice %186 {offsets = [0, 64], sizes = [8, 32], strides = [1, 1]} : vector<8x128xf32> to vector<8x32xf32>
    %200 = math.tanh %199 : vector<8x32xf32>
    %201 = vector.extract_strided_slice %186 {offsets = [0, 96], sizes = [8, 32], strides = [1, 1]} : vector<8x128xf32> to vector<8x32xf32>
    %202 = arith.negf %201 : vector<8x32xf32>
    %203 = math.exp %202 : vector<8x32xf32>
    %cst_52 = arith.constant 1.000000e+00 : f32
    %204 = vector.broadcast %cst_52 : f32 to vector<8x32xf32>
    %205 = arith.addf %204, %203 : vector<8x32xf32>
    %206 = arith.divf %204, %205 : vector<8x32xf32>
    %207 = arith.mulf %198, %176 : vector<8x32xf32>
    %208 = arith.mulf %192, %200 : vector<8x32xf32>
    %209 = arith.addf %207, %208 : vector<8x32xf32>
    %210 = math.tanh %209 : vector<8x32xf32>
    %211 = arith.mulf %206, %210 : vector<8x32xf32>
    %212 = arith.index_cast %182 : i32 to index
    %c0_53 = arith.constant 0 : index
    %213 = vector.load %arg11[%212, %c0_53] : memref<64x32xf32, #tpu.memory_space<vmem>>, vector<8x32xf32>
    tpu.vector_store %arg11[%212, %c0_53], %211 {strides = array<i32>} : memref<64x32xf32, #tpu.memory_space<vmem>>, vector<8x32xf32>,
    %c6_i32 = arith.constant 6 : i32
    %c8_i32_54 = arith.constant 8 : i32
    %214 = arith.muli %c6_i32, %c8_i32_54 : i32
    %215 = tpu.assume_multiple %214, 8 : i32
    %216 = arith.index_cast %215 : i32 to index
    %c0_55 = arith.constant 0 : index
    %217 = vector.load %arg10[%216, %c0_55] : memref<64x128xf32, #tpu.memory_space<vmem>>, vector<8x128xf32>
    %cst_56 = arith.constant dense<0.000000e+00> : vector<8x128xf32>
    %218 = tpu.matmul %211, %14, %cst_56 {dimension_numbers = #tpu.dot_dimension_numbers<[1], [0], [0], [1], [0, 0, 1, 1], [], []>} : vector<8x32xf32>, vector<32x128xf32>, vector<8x128xf32> -> vector<8x128xf32>
    %219 = arith.addf %217, %218 : vector<8x128xf32>
    %220 = vector.extract_strided_slice %219 {offsets = [0, 0], sizes = [8, 32], strides = [1, 1]} : vector<8x128xf32> to vector<8x32xf32>
    %221 = arith.negf %220 : vector<8x32xf32>
    %222 = math.exp %221 : vector<8x32xf32>
    %cst_57 = arith.constant 1.000000e+00 : f32
    %223 = vector.broadcast %cst_57 : f32 to vector<8x32xf32>
    %224 = arith.addf %223, %222 : vector<8x32xf32>
    %225 = arith.divf %223, %224 : vector<8x32xf32>
    %226 = vector.extract_strided_slice %219 {offsets = [0, 32], sizes = [8, 32], strides = [1, 1]} : vector<8x128xf32> to vector<8x32xf32>
    %227 = arith.negf %226 : vector<8x32xf32>
    %228 = math.exp %227 : vector<8x32xf32>
    %cst_58 = arith.constant 1.000000e+00 : f32
    %229 = vector.broadcast %cst_58 : f32 to vector<8x32xf32>
    %230 = arith.addf %229, %228 : vector<8x32xf32>
    %231 = arith.divf %229, %230 : vector<8x32xf32>
    %232 = vector.extract_strided_slice %219 {offsets = [0, 64], sizes = [8, 32], strides = [1, 1]} : vector<8x128xf32> to vector<8x32xf32>
    %233 = math.tanh %232 : vector<8x32xf32>
    %234 = vector.extract_strided_slice %219 {offsets = [0, 96], sizes = [8, 32], strides = [1, 1]} : vector<8x128xf32> to vector<8x32xf32>
    %235 = arith.negf %234 : vector<8x32xf32>
    %236 = math.exp %235 : vector<8x32xf32>
    %cst_59 = arith.constant 1.000000e+00 : f32
    %237 = vector.broadcast %cst_59 : f32 to vector<8x32xf32>
    %238 = arith.addf %237, %236 : vector<8x32xf32>
    %239 = arith.divf %237, %238 : vector<8x32xf32>
    %240 = arith.mulf %231, %209 : vector<8x32xf32>
    %241 = arith.mulf %225, %233 : vector<8x32xf32>
    %242 = arith.addf %240, %241 : vector<8x32xf32>
    %243 = math.tanh %242 : vector<8x32xf32>
    %244 = arith.mulf %239, %243 : vector<8x32xf32>
    %245 = arith.index_cast %215 : i32 to index
    %c0_60 = arith.constant 0 : index
    %246 = vector.load %arg11[%245, %c0_60] : memref<64x32xf32, #tpu.memory_space<vmem>>, vector<8x32xf32>
    tpu.vector_store %arg11[%245, %c0_60], %244 {strides = array<i32>} : memref<64x32xf32, #tpu.memory_space<vmem>>, vector<8x32xf32>,
    %c7_i32 = arith.constant 7 : i32
    %c8_i32_61 = arith.constant 8 : i32
    %247 = arith.muli %c7_i32, %c8_i32_61 : i32
    %248 = tpu.assume_multiple %247, 8 : i32
    %249 = arith.index_cast %248 : i32 to index
    %c0_62 = arith.constant 0 : index
    %250 = vector.load %arg10[%249, %c0_62] : memref<64x128xf32, #tpu.memory_space<vmem>>, vector<8x128xf32>
    %cst_63 = arith.constant dense<0.000000e+00> : vector<8x128xf32>
    %251 = tpu.matmul %244, %14, %cst_63 {dimension_numbers = #tpu.dot_dimension_numbers<[1], [0], [0], [1], [0, 0, 1, 1], [], []>} : vector<8x32xf32>, vector<32x128xf32>, vector<8x128xf32> -> vector<8x128xf32>
    %252 = arith.addf %250, %251 : vector<8x128xf32>
    %253 = vector.extract_strided_slice %252 {offsets = [0, 0], sizes = [8, 32], strides = [1, 1]} : vector<8x128xf32> to vector<8x32xf32>
    %254 = arith.negf %253 : vector<8x32xf32>
    %255 = math.exp %254 : vector<8x32xf32>
    %cst_64 = arith.constant 1.000000e+00 : f32
    %256 = vector.broadcast %cst_64 : f32 to vector<8x32xf32>
    %257 = arith.addf %256, %255 : vector<8x32xf32>
    %258 = arith.divf %256, %257 : vector<8x32xf32>
    %259 = vector.extract_strided_slice %252 {offsets = [0, 32], sizes = [8, 32], strides = [1, 1]} : vector<8x128xf32> to vector<8x32xf32>
    %260 = arith.negf %259 : vector<8x32xf32>
    %261 = math.exp %260 : vector<8x32xf32>
    %cst_65 = arith.constant 1.000000e+00 : f32
    %262 = vector.broadcast %cst_65 : f32 to vector<8x32xf32>
    %263 = arith.addf %262, %261 : vector<8x32xf32>
    %264 = arith.divf %262, %263 : vector<8x32xf32>
    %265 = vector.extract_strided_slice %252 {offsets = [0, 64], sizes = [8, 32], strides = [1, 1]} : vector<8x128xf32> to vector<8x32xf32>
    %266 = math.tanh %265 : vector<8x32xf32>
    %267 = vector.extract_strided_slice %252 {offsets = [0, 96], sizes = [8, 32], strides = [1, 1]} : vector<8x128xf32> to vector<8x32xf32>
    %268 = arith.negf %267 : vector<8x32xf32>
    %269 = math.exp %268 : vector<8x32xf32>
    %cst_66 = arith.constant 1.000000e+00 : f32
    %270 = vector.broadcast %cst_66 : f32 to vector<8x32xf32>
    %271 = arith.addf %270, %269 : vector<8x32xf32>
    %272 = arith.divf %270, %271 : vector<8x32xf32>
    %273 = arith.mulf %264, %242 : vector<8x32xf32>
    %274 = arith.mulf %258, %266 : vector<8x32xf32>
    %275 = arith.addf %273, %274 : vector<8x32xf32>
    %276 = math.tanh %275 : vector<8x32xf32>
    %277 = arith.mulf %272, %276 : vector<8x32xf32>
    %278 = arith.index_cast %248 : i32 to index
    %c0_67 = arith.constant 0 : index
    %279 = vector.load %arg11[%278, %c0_67] : memref<64x32xf32, #tpu.memory_space<vmem>>, vector<8x32xf32>
    tpu.vector_store %arg11[%278, %c0_67], %277 {strides = array<i32>} : memref<64x32xf32, #tpu.memory_space<vmem>>, vector<8x32xf32>,
    %c8_i32_68 = arith.constant 8 : i32
    %c0_69 = arith.constant 0 : index
    %c0_70 = arith.constant 0 : index
    %280 = vector.load %arg8[%c0_69, %c0_70] : memref<8x32xf32, #tpu.memory_space<vmem>>, vector<8x32xf32>
    tpu.vector_store %arg8[%c0_69, %c0_70], %277 {strides = array<i32>} : memref<8x32xf32, #tpu.memory_space<vmem>>, vector<8x32xf32>,
    %c0_71 = arith.constant 0 : index
    %c0_72 = arith.constant 0 : index
    %281 = vector.load %arg9[%c0_71, %c0_72] : memref<8x32xf32, #tpu.memory_space<vmem>>, vector<8x32xf32>
    tpu.vector_store %arg9[%c0_71, %c0_72], %275 {strides = array<i32>} : memref<8x32xf32, #tpu.memory_space<vmem>>, vector<8x32xf32>,
    %c0_73 = arith.constant 0 : index
    %c0_74 = arith.constant 0 : index
    %282 = vector.load %arg11[%c0_73, %c0_74] : memref<64x32xf32, #tpu.memory_space<vmem>>, vector<64x32xf32>
    %c0_75 = arith.constant 0 : index
    %c0_76 = arith.constant 0 : index
    %283 = vector.load %arg5[%c0_75, %c0_76] : memref<32x16xf32, #tpu.memory_space<vmem>>, vector<32x16xf32>
    %cst_77 = arith.constant dense<0.000000e+00> : vector<64x16xf32>
    %284 = tpu.matmul %282, %283, %cst_77 {dimension_numbers = #tpu.dot_dimension_numbers<[1], [0], [0], [1], [0, 0, 1, 1], [], []>} : vector<64x32xf32>, vector<32x16xf32>, vector<64x16xf32> -> vector<64x16xf32>
    %c0_78 = arith.constant 0 : index
    %c0_79 = arith.constant 0 : index
    %285 = vector.load %arg6[%c0_78, %c0_79] : memref<1x16xf32, #tpu.memory_space<vmem>>, vector<1x16xf32>
    %286 = vector.broadcast %285 : vector<1x16xf32> to vector<64x16xf32>
    %287 = arith.addf %284, %286 : vector<64x16xf32>
    %c0_80 = arith.constant 0 : index
    %c0_81 = arith.constant 0 : index
    %288 = vector.load %arg7[%c0_80, %c0_81] : memref<64x16xf32, #tpu.memory_space<vmem>>, vector<64x16xf32>
    tpu.vector_store %arg7[%c0_80, %c0_81], %287 {strides = array<i32>} : memref<64x16xf32, #tpu.memory_space<vmem>>, vector<64x16xf32>,
    return
  }
}

</mosaic_0001>

<llo_original>
// kernel: tpu_custom_call.1
$region0: #{tpu_custom_call.1}
  #allocation0 [shape = 'u32[]', space=smem, size = 0x4, offset = 0x4, fixed_abs, tag = 'smem constant byte address 0x4 - core index']
  #allocation1 [shape = 'u32[144,128]{1,0:T(1,128)}', space=vmem, size = 0x12000, scoped, tag = 'internal scratch']
  #allocation2 [shape = 'f32[64,128]{1,0:T(8,128)}', space=vmem, size = 0x8000, scoped, tag = 'scratch operand']
  #allocation3 [shape = 'f32[64,32]{1,0:T(8,128)}', space=vmem, size = 0x8000, scoped, tag = 'scratch operand']
  %s0 = inlined_call_operand.vmem [shape: s32[64,1], index: 0, kind: input, shape index: {}]
  %s1 = inlined_call_operand.vmem [shape: f32[16,32], index: 1, kind: input, shape index: {}]
  %s2 = inlined_call_operand.vmem [shape: f32[32,128], index: 2, kind: input, shape index: {}]
  %s3 = inlined_call_operand.vmem [shape: f32[32,128], index: 3, kind: input, shape index: {}]
  %s4 = inlined_call_operand.vmem [shape: f32[1,128], index: 4, kind: input, shape index: {}]
  %s5 = inlined_call_operand.vmem [shape: f32[32,16], index: 5, kind: input, shape index: {}]
  %s6 = inlined_call_operand.vmem [shape: f32[1,16], index: 6, kind: input, shape index: {}]
  %s7 = inlined_call_operand.vmem [shape: f32[64,16], index: 7, kind: output, shape index: {0}]
  %s8 = inlined_call_operand.hbm [shape: f32[8,32], index: 8, kind: output, shape index: {1}]
  %s9 = inlined_call_operand.hbm [shape: f32[8,32], index: 9, kind: output, shape index: {2}]
  %10 = xla_tuple %s7, %s8, %s9
  %s11 = sld [smem:[#allocation0]]
  $region54: #{tpu_custom_call.1} parent=0
    _
  %s13 = ssub.s32 1, %s11
  %s14 = scalar_select 0, %s13, %s11
  $region1: #{tpu_custom_call.1} parent=0
    #allocation4 [shape = 'u8[4096]{0}', space=vmem, size = 0x1000, scoped, tag = 'output window, operand 1, single buffered']
    #allocation5 [shape = 's32[1]{0}', space=sflag, size = 0x4, scoped, tag = 'scoped memory for tpu_custom_call.1']
    #allocation6 [shape = 'u8[4096]{0}', space=vmem, size = 0x1000, scoped, tag = 'output window, operand 2, single buffered']
    #allocation7 [shape = 's32[1]{0}', space=sflag, size = 0x4, scoped, tag = 'scoped memory for tpu_custom_call.1']
    %15 = vsyncpa [#allocation5], 0
    %16 = vsyncpa [#allocation7], 0
    // Predicated region
    $region2: #{tpu_custom_call.1} parent=1 // pred_check
      _
    $region3: #{tpu_custom_call.1} parent=1 // pred_check_branch
      %18 = sbr.rel (0) target = $region5
    $region4: #{tpu_custom_call.1} parent=1 // pred_region
      _
    $region5: #{tpu_custom_call.1} parent=1 // pred_fallthru
      _
    // Predicated region
    $region6: #{tpu_custom_call.1} parent=1 // pred_check
      _
    $region7: #{tpu_custom_call.1} parent=1 // pred_check_branch
      %20 = sbr.rel (0) target = $region9
    $region8: #{tpu_custom_call.1} parent=1 // pred_region
      _
    $region9: #{tpu_custom_call.1} parent=1 // pred_fallthru
      _
    // Predicated region
    $region10: #{tpu_custom_call.1} parent=1 // pred_check
      _
    $region11: #{tpu_custom_call.1} parent=1 // pred_check_branch
      %22 = sbr.rel (0) target = $region13
    $region12: #{tpu_custom_call.1} parent=1 // pred_region
      _
    $region13: #{tpu_custom_call.1} parent=1 // pred_fallthru
      _
    // Predicated region
    $region14: #{tpu_custom_call.1} parent=1 // pred_check
      _
    $region15: #{tpu_custom_call.1} parent=1 // pred_check_branch
      %24 = sbr.rel (0) target = $region17
    $region16: #{tpu_custom_call.1} parent=1 // pred_region
      _
    $region17: #{tpu_custom_call.1} parent=1 // pred_fallthru
      _
    // Predicated region
    $region18: #{tpu_custom_call.1} parent=1 // pred_check
      _
    $region19: #{tpu_custom_call.1} parent=1 // pred_check_branch
      %26 = sbr.rel (0) target = $region21
    $region20: #{tpu_custom_call.1} parent=1 // pred_region
      _
    $region21: #{tpu_custom_call.1} parent=1 // pred_fallthru
      _
    // Predicated region
    $region22: #{tpu_custom_call.1} parent=1 // pred_check
      _
    $region23: #{tpu_custom_call.1} parent=1 // pred_check_branch
      %28 = sbr.rel (0) target = $region25
    $region24: #{tpu_custom_call.1} parent=1 // pred_region
      _
    $region25: #{tpu_custom_call.1} parent=1 // pred_fallthru
      _
    // Predicated region
    $region26: #{tpu_custom_call.1} parent=1 // pred_check
      _
    $region27: #{tpu_custom_call.1} parent=1 // pred_check_branch
      %30 = sbr.rel (0) target = $region29
    $region28: #{tpu_custom_call.1} parent=1 // pred_region
      _
    $region29: #{tpu_custom_call.1} parent=1 // pred_fallthru
      _
    %v31 = vld [vmem:[%s1] sm:$0xff]
    %v32 = vld [vmem:[%s1 + $0x8] sm:$0xff]
    %v33 = vld [vmem:[%s2] sm:$0xff]
    %v34 = vld [vmem:[%s2 + $0x8] sm:$0xff]
    %v35 = vld [vmem:[%s2 + $0x10] sm:$0xff]
    %v36 = vld [vmem:[%s2 + $0x18] sm:$0xff]
    %v37 = vld [vmem:[%s4] sm:$0x1]
    %v39 = vlaneseq
    %v40 = vshrl.u32 %v39, 7
    %v41 = vsub.s32 0, %v40
    %v42 = vrot.slane %v37, %v41
    %vm44 = vcmask 261120
    %v46 = vsel %vm44, %v31, 0
    %v49 = vsel %vm44, %v32, 0
    %51 = vmatprep.subr.mxu0 0.0
    %52 = vmatpush1.msra.mxu0 %v33
    %53 = vmatprep.subr.mxu0 0.0
    %54 = vmatpush1.msra.mxu0 %v34
    %55 = vmatprep.subr.mxu0 0.0
    %56 = vmatpush1.msra.mxu0 %v35
    %57 = vmatprep.subr.mxu0 0.0
    %58 = vmatpush1.msra.mxu0 %v36
    %59 = vmatprep.subr.mxu0 0.0
    %60 = vmatpush1.msra.mxu0 0.0
    %61 = vmatprep.subr.mxu0 0.0
    %62 = vmatpush1.msra.mxu0 0.0
    %63 = vmatprep.subr.mxu0 0.0
    %64 = vmatpush1.msra.mxu0 0.0
    %65 = vmatprep.subr.mxu0 0.0
    %66 = vmatpush1.msra.mxu0 0.0
    %67 = vmatprep.subr.mxu0 0.0
    %68 = vmatpush1.msra.mxu0 0.0
    %69 = vmatprep.subr.mxu0 0.0
    %70 = vmatpush1.msra.mxu0 0.0
    %71 = vmatprep.subr.mxu0 0.0
    %72 = vmatpush1.msra.mxu0 0.0
    %73 = vmatprep.subr.mxu0 0.0
    %74 = vmatpush1.msra.mxu0 0.0
    %75 = vmatprep.subr.mxu0 0.0
    %76 = vmatpush1.msra.mxu0 0.0
    %77 = vmatprep.subr.mxu0 0.0
    %78 = vmatpush1.msra.mxu0 0.0
    %79 = vmatprep.subr.mxu0 0.0
    %80 = vmatpush1.msra.mxu0 0.0
    %81 = vmatprep.subr.mxu0 0.0
    %82 = vmatpush1.msra.mxu0 0.0
    %83 = vmatprep.subr.mxu0 0.0
    %84 = vmatpush1.msra.mxu0 0.0
    %85 = vmatprep.subr.mxu0 0.0
    %86 = vmatpush1.msra.mxu0 0.0
    %87 = vmatprep.subr.mxu0 0.0
    %88 = vmatpush1.msra.mxu0 0.0
    %89 = vmatprep.subr.mxu0 0.0
    %90 = vmatpush1.msra.mxu0 0.0
    %91 = vmatprep.subr.mxu0 0.0
    %92 = vmatpush1.msra.mxu0 0.0
    %93 = vmatprep.subr.mxu0 0.0
    %94 = vmatpush1.msra.mxu0 0.0
    %95 = vmatprep.subr.mxu0 0.0
    %96 = vmatpush1.msra.mxu0 0.0
    %97 = vmatprep.subr.mxu0 0.0
    %98 = vmatpush1.msra.mxu0 0.0
    %99 = vmatprep.subr.mxu0 0.0
    %100 = vmatpush1.msra.mxu0 0.0
    %101 = vmatprep.subr.mxu0 0.0
    %102 = vmatpush1.msra.mxu0 0.0
    %103 = vmatprep.subr.mxu0 0.0
    %104 = vmatpush1.msra.mxu0 0.0
    %105 = vmatprep.subr.mxu0 0.0
    %106 = vmatpush1.msra.mxu0 0.0
    %107 = vmatprep.subr.mxu0 0.0
    %108 = vmatpush1.msra.mxu0 0.0
    %109 = vmatprep.subr.mxu0 0.0
    %110 = vmatpush1.msra.mxu0 0.0
    %111 = vmatprep.subr.mxu0 0.0
    %112 = vmatpush1.msra.mxu0 0.0
    %113 = vmatprep.subr.mxu0 0.0
    %114 = vmatpush1.msra.mxu0 0.0
    %115 = vmatprep.mubr.f32.mxu0 0.0
    %116 = vmatmul.mubr.f32.gmra.mrb[0].mxu0 %v46
    %v117 = vpop.f32.mrb[0].mxu0
    %v118 = vadd.f32 %v42, %v117
    %v119 = vpop.f32.mrb[0].mxu0
    %120 = vmatprep.mubr.f32.mxu0 0.0
    %121 = vmatmul.mubr.f32.gmra.mrb[0].mxu0 %v49
    %v122 = vpop.f32.mrb[0].mxu0
    %v123 = vadd.f32 %v42, %v122
    %v124 = vpop.f32.mrb[0].mxu0
    %125 = vdwg.mxu0
    %v126 = vld [vmem:[%s0] sm:$0xff]
    %v127 = vld [vmem:[%s0 + $0x8] sm:$0xff]
    %v128 = vld [vmem:[%s0 + $0x10] sm:$0xff]
    %v129 = vld [vmem:[%s0 + $0x18] sm:$0xff]
    %v130 = vld [vmem:[%s0 + $0x20] sm:$0xff]
    %v131 = vld [vmem:[%s0 + $0x28] sm:$0xff]
    %v132 = vld [vmem:[%s0 + $0x30] sm:$0xff]
    %v133 = vld [vmem:[%s0 + $0x38] sm:$0xff]
    %v134 = vlaneseq
    %v135 = vand.u32 %v134, 127
    %136 = vset.pattern.permute.xlu0 0
    %137 = vperm.xlu0 %136, %v126
    %v138 = vpop.permute.xlu0 %137
    %139 = vset.pattern.permute.xlu0 0
    %140 = vperm.xlu0 %139, %v127
    %v141 = vpop.permute.xlu0 %140
    %142 = vset.pattern.permute.xlu0 0
    %143 = vperm.xlu0 %142, %v128
    %v144 = vpop.permute.xlu0 %143
    %145 = vset.pattern.permute.xlu0 0
    %146 = vperm.xlu0 %145, %v129
    %v147 = vpop.permute.xlu0 %146
    %148 = vset.pattern.permute.xlu0 0
    %149 = vperm.xlu0 %148, %v130
    %v150 = vpop.permute.xlu0 %149
    %151 = vset.pattern.permute.xlu0 0
    %152 = vperm.xlu0 %151, %v131
    %v153 = vpop.permute.xlu0 %152
    %154 = vset.pattern.permute.xlu0 0
    %155 = vperm.xlu0 %154, %v132
    %v156 = vpop.permute.xlu0 %155
    %157 = vset.pattern.permute.xlu0 0
    %158 = vperm.xlu0 %157, %v133
    %v159 = vpop.permute.xlu0 %158
    %vm160 = vcmp.eq.s32.totalorder %v135, %v138
    %vm161 = vcmp.eq.s32.totalorder %v135, %v141
    %vm162 = vcmp.eq.s32.totalorder %v135, %v144
    %vm163 = vcmp.eq.s32.totalorder %v135, %v147
    %vm164 = vcmp.eq.s32.totalorder %v135, %v150
    %vm165 = vcmp.eq.s32.totalorder %v135, %v153
    %vm166 = vcmp.eq.s32.totalorder %v135, %v156
    %vm167 = vcmp.eq.s32.totalorder %v135, %v159
    %v168 = vsel %vm160, 1, 0
    %v169 = vsel %vm161, 1, 0
    %v170 = vsel %vm162, 1, 0
    %v171 = vsel %vm163, 1, 0
    %v172 = vsel %vm164, 1, 0
    %v173 = vsel %vm165, 1, 0
    %v174 = vsel %vm166, 1, 0
    %v175 = vsel %vm167, 1, 0
    %v176 = vcvt.s32.f32 %v168
    %v177 = vcvt.s32.f32 %v169
    %v178 = vcvt.s32.f32 %v170
    %v179 = vcvt.s32.f32 %v171
    %v180 = vcvt.s32.f32 %v172
    %v181 = vcvt.s32.f32 %v173
    %v182 = vcvt.s32.f32 %v174
    %v183 = vcvt.s32.f32 %v175
    %vm184 = vcmask 130048
    %v186 = vsel %vm184, %v176, 0
    %v189 = vsel %vm184, %v177, 0
    %v192 = vsel %vm184, %v178, 0
    %v195 = vsel %vm184, %v179, 0
    %v198 = vsel %vm184, %v180, 0
    %v201 = vsel %vm184, %v181, 0
    %v204 = vsel %vm184, %v182, 0
    %v207 = vsel %vm184, %v183, 0
    %209 = vmatprep.subr.mxu0 0.0
    %210 = vmatpush1.msra.mxu0 %v118
    %211 = vmatprep.subr.mxu0 0.0
    %212 = vmatpush1.msra.mxu0 %v123
    %213 = vmatprep.subr.mxu0 0.0
    %214 = vmatpush1.msra.mxu0 0.0
    %215 = vmatprep.subr.mxu0 0.0
    %216 = vmatpush1.msra.mxu0 0.0
    %217 = vmatprep.subr.mxu0 0.0
    %218 = vmatpush1.msra.mxu0 0.0
    %219 = vmatprep.subr.mxu0 0.0
    %220 = vmatpush1.msra.mxu0 0.0
    %221 = vmatprep.subr.mxu0 0.0
    %222 = vmatpush1.msra.mxu0 0.0
    %223 = vmatprep.subr.mxu0 0.0
    %224 = vmatpush1.msra.mxu0 0.0
    %225 = vmatprep.subr.mxu0 0.0
    %226 = vmatpush1.msra.mxu0 0.0
    %227 = vmatprep.subr.mxu0 0.0
    %228 = vmatpush1.msra.mxu0 0.0
    %229 = vmatprep.subr.mxu0 0.0
    %230 = vmatpush1.msra.mxu0 0.0
    %231 = vmatprep.subr.mxu0 0.0
    %232 = vmatpush1.msra.mxu0 0.0
    %233 = vmatprep.subr.mxu0 0.0
    %234 = vmatpush1.msra.mxu0 0.0
    %235 = vmatprep.subr.mxu0 0.0
    %236 = vmatpush1.msra.mxu0 0.0
    %237 = vmatprep.subr.mxu0 0.0
    %238 = vmatpush1.msra.mxu0 0.0
    %239 = vmatprep.subr.mxu0 0.0
    %240 = vmatpush1.msra.mxu0 0.0
    %241 = vmatprep.subr.mxu0 0.0
    %242 = vmatpush1.msra.mxu0 0.0
    %243 = vmatprep.subr.mxu0 0.0
    %244 = vmatpush1.msra.mxu0 0.0
    %245 = vmatprep.subr.mxu0 0.0
    %246 = vmatpush1.msra.mxu0 0.0
    %247 = vmatprep.subr.mxu0 0.0
    %248 = vmatpush1.msra.mxu0 0.0
    %249 = vmatprep.subr.mxu0 0.0
    %250 = vmatpush1.msra.mxu0 0.0
    %251 = vmatprep.subr.mxu0 0.0
    %252 = vmatpush1.msra.mxu0 0.0
    %253 = vmatprep.subr.mxu0 0.0
    %254 = vmatpush1.msra.mxu0 0.0
    %255 = vmatprep.subr.mxu0 0.0
    %256 = vmatpush1.msra.mxu0 0.0
    %257 = vmatprep.subr.mxu0 0.0
    %258 = vmatpush1.msra.mxu0 0.0
    %259 = vmatprep.subr.mxu0 0.0
    %260 = vmatpush1.msra.mxu0 0.0
    %261 = vmatprep.subr.mxu0 0.0
    %262 = vmatpush1.msra.mxu0 0.0
    %263 = vmatprep.subr.mxu0 0.0
    %264 = vmatpush1.msra.mxu0 0.0
    %265 = vmatprep.subr.mxu0 0.0
    %266 = vmatpush1.msra.mxu0 0.0
    %267 = vmatprep.subr.mxu0 0.0
    %268 = vmatpush1.msra.mxu0 0.0
    %269 = vmatprep.subr.mxu0 0.0
    %270 = vmatpush1.msra.mxu0 0.0
    %271 = vmatprep.subr.mxu0 0.0
    %272 = vmatpush1.msra.mxu0 0.0
    %273 = vmatprep.mubr.f32.mxu0 0.0
    %274 = vmatmul.mubr.f32.gmra.mrb[0].mxu0 %v186
    %v275 = vpop.f32.mrb[0].mxu0
    %v276 = vadd.f32 0.0, %v275
    %v277 = vpop.f32.mrb[0].mxu0
    %278 = vmatprep.mubr.f32.mxu0 0.0
    %279 = vmatmul.mubr.f32.gmra.mrb[0].mxu0 %v189
    %v280 = vpop.f32.mrb[0].mxu0
    %v281 = vadd.f32 0.0, %v280
    %v282 = vpop.f32.mrb[0].mxu0
    %283 = vmatprep.mubr.f32.mxu0 0.0
    %284 = vmatmul.mubr.f32.gmra.mrb[0].mxu0 %v192
    %v285 = vpop.f32.mrb[0].mxu0
    %v286 = vadd.f32 0.0, %v285
    %v287 = vpop.f32.mrb[0].mxu0
    %288 = vmatprep.mubr.f32.mxu0 0.0
    %289 = vmatmul.mubr.f32.gmra.mrb[0].mxu0 %v195
    %v290 = vpop.f32.mrb[0].mxu0
    %v291 = vadd.f32 0.0, %v290
    %v292 = vpop.f32.mrb[0].mxu0
    %293 = vmatprep.mubr.f32.mxu0 0.0
    %294 = vmatmul.mubr.f32.gmra.mrb[0].mxu0 %v198
    %v295 = vpop.f32.mrb[0].mxu0
    %v296 = vadd.f32 0.0, %v295
    %v297 = vpop.f32.mrb[0].mxu0
    %298 = vmatprep.mubr.f32.mxu0 0.0
    %299 = vmatmul.mubr.f32.gmra.mrb[0].mxu0 %v201
    %v300 = vpop.f32.mrb[0].mxu0
    %v301 = vadd.f32 0.0, %v300
    %v302 = vpop.f32.mrb[0].mxu0
    %303 = vmatprep.mubr.f32.mxu0 0.0
    %304 = vmatmul.mubr.f32.gmra.mrb[0].mxu0 %v204
    %v305 = vpop.f32.mrb[0].mxu0
    %v306 = vadd.f32 0.0, %v305
    %v307 = vpop.f32.mrb[0].mxu0
    %308 = vmatprep.mubr.f32.mxu0 0.0
    %309 = vmatmul.mubr.f32.gmra.mrb[0].mxu0 %v207
    %v310 = vpop.f32.mrb[0].mxu0
    %v311 = vadd.f32 0.0, %v310
    %v312 = vpop.f32.mrb[0].mxu0
    %313 = vdwg.mxu0
    %314 = vst [vmem:[#allocation2] sm:$0xff] %v276
    %315 = vst [vmem:[#allocation2 + $0x8] sm:$0xff] %v281
    %316 = vst [vmem:[#allocation2 + $0x10] sm:$0xff] %v286
    %317 = vst [vmem:[#allocation2 + $0x18] sm:$0xff] %v291
    %318 = vst [vmem:[#allocation2 + $0x20] sm:$0xff] %v296
    %319 = vst [vmem:[#allocation2 + $0x28] sm:$0xff] %v301
    %320 = vst [vmem:[#allocation2 + $0x30] sm:$0xff] %v306
    %321 = vst [vmem:[#allocation2 + $0x38] sm:$0xff] %v311
    %v322 = vld [vmem:[%s3] sm:$0xff]
    %v323 = vld [vmem:[%s3 + $0x8] sm:$0xff]
    %v324 = vld [vmem:[%s3 + $0x10] sm:$0xff]
    %v325 = vld [vmem:[%s3 + $0x18] sm:$0xff]
    %v326 = vld [vmem:[#allocation2] sm:$0xff]
    %v328 = vsel %vm44, 0.0, 0
    %330 = vmatprep.subr.mxu0 0.0
    %331 = vmatpush1.msra.mxu0 %v322
    %332 = vmatprep.subr.mxu0 0.0
    %333 = vmatpush1.msra.mxu0 %v323
    %334 = vmatprep.subr.mxu0 0.0
    %335 = vmatpush1.msra.mxu0 %v324
    %336 = vmatprep.subr.mxu0 0.0
    %337 = vmatpush1.msra.mxu0 %v325
    %338 = vmatprep.subr.mxu0 0.0
    %339 = vmatpush1.msra.mxu0 0.0
    %340 = vmatprep.subr.mxu0 0.0
    %341 = vmatpush1.msra.mxu0 0.0
    %342 = vmatprep.subr.mxu0 0.0
    %343 = vmatpush1.msra.mxu0 0.0
    %344 = vmatprep.subr.mxu0 0.0
    %345 = vmatpush1.msra.mxu0 0.0
    %346 = vmatprep.subr.mxu0 0.0
    %347 = vmatpush1.msra.mxu0 0.0
    %348 = vmatprep.subr.mxu0 0.0
    %349 = vmatpush1.msra.mxu0 0.0
    %350 = vmatprep.subr.mxu0 0.0
    %351 = vmatpush1.msra.mxu0 0.0
    %352 = vmatprep.subr.mxu0 0.0
    %353 = vmatpush1.msra.mxu0 0.0
    %354 = vmatprep.subr.mxu0 0.0
    %355 = vmatpush1.msra.mxu0 0.0
    %356 = vmatprep.subr.mxu0 0.0
    %357 = vmatpush1.msra.mxu0 0.0
    %358 = vmatprep.subr.mxu0 0.0
    %359 = vmatpush1.msra.mxu0 0.0
    %360 = vmatprep.subr.mxu0 0.0
    %361 = vmatpush1.msra.mxu0 0.0
    %362 = vmatprep.subr.mxu0 0.0
    %363 = vmatpush1.msra.mxu0 0.0
    %364 = vmatprep.subr.mxu0 0.0
    %365 = vmatpush1.msra.mxu0 0.0
    %366 = vmatprep.subr.mxu0 0.0
    %367 = vmatpush1.msra.mxu0 0.0
    %368 = vmatprep.subr.mxu0 0.0
    %369 = vmatpush1.msra.mxu0 0.0
    %370 = vmatprep.subr.mxu0 0.0
    %371 = vmatpush1.msra.mxu0 0.0
    %372 = vmatprep.subr.mxu0 0.0
    %373 = vmatpush1.msra.mxu0 0.0
    %374 = vmatprep.subr.mxu0 0.0
    %375 = vmatpush1.msra.mxu0 0.0
    %376 = vmatprep.subr.mxu0 0.0
    %377 = vmatpush1.msra.mxu0 0.0
    %378 = vmatprep.subr.mxu0 0.0
    %379 = vmatpush1.msra.mxu0 0.0
    %380 = vmatprep.subr.mxu0 0.0
    %381 = vmatpush1.msra.mxu0 0.0
    %382 = vmatprep.subr.mxu0 0.0
    %383 = vmatpush1.msra.mxu0 0.0
    %384 = vmatprep.subr.mxu0 0.0
    %385 = vmatpush1.msra.mxu0 0.0
    %386 = vmatprep.subr.mxu0 0.0
    %387 = vmatpush1.msra.mxu0 0.0
    %388 = vmatprep.subr.mxu0 0.0
    %389 = vmatpush1.msra.mxu0 0.0
    %390 = vmatprep.subr.mxu0 0.0
    %391 = vmatpush1.msra.mxu0 0.0
    %392 = vmatprep.subr.mxu0 0.0
    %393 = vmatpush1.msra.mxu0 0.0
    %394 = vmatprep.mubr.f32.mxu0 0.0
    %395 = vmatmul.mubr.f32.gmra.mrb[0].mxu0 %v328
    %v396 = vpop.f32.mrb[0].mxu0
    %v397 = vadd.f32 0.0, %v396
    %v398 = vpop.f32.mrb[0].mxu0
    %399 = vdwg.mxu0
    %v400 = vadd.f32 %v326, %v397
    %v401 = vxor.u32 %v400, 2147483648
    %v402 = vmul.f32 %v401, 1.442695
    %v403 = vpow.pop %v402
    %v404 = vadd.f32 %v403, 1.0
    %v405 = vrcp.pop %v404
    %v406 = vmul.f32 1.0, %v405
    %v407 = vtanh.pop %v400
    %v408 = vmul.f32 %v406, 0.0
    %410 = vrot.lane.b32.xlu0 %v407, 64
    %v411 = vpop.permute.xlu0 %410
    %v413 = vmul.f32 %v406, %v411
    %415 = vrot.lane.b32.xlu0 %v413, 32
    %v416 = vpop.permute.xlu0 %415
    %v418 = vadd.f32 %v408, %v416
    %v419 = vtanh.pop %v418
    %421 = vrot.lane.b32.xlu0 %v419, 64
    %v422 = vpop.permute.xlu0 %421
    %v424 = vmul.f32 %v406, %v422
    %426 = vrot.lane.b32.xlu0 %v424, 32
    %v427 = vpop.permute.xlu0 %426
    %429 = vst.msk [vmem:[#allocation3] sm:$0xff] %vm44, %v427
    %s430 = scalar_lea.vmem [#allocation2], 8
    %v431 = vld [vmem:[%s430] sm:$0xff]
    %v432 = vsel %vm44, %v427, 0
    %434 = vmatprep.subr.mxu0 0.0
    %435 = vmatpush1.msra.mxu0 %v322
    %436 = vmatprep.subr.mxu0 0.0
    %437 = vmatpush1.msra.mxu0 %v323
    %438 = vmatprep.subr.mxu0 0.0
    %439 = vmatpush1.msra.mxu0 %v324
    %440 = vmatprep.subr.mxu0 0.0
    %441 = vmatpush1.msra.mxu0 %v325
    %442 = vmatprep.subr.mxu0 0.0
    %443 = vmatpush1.msra.mxu0 0.0
    %444 = vmatprep.subr.mxu0 0.0
    %445 = vmatpush1.msra.mxu0 0.0
    %446 = vmatprep.subr.mxu0 0.0
    %447 = vmatpush1.msra.mxu0 0.0
    %448 = vmatprep.subr.mxu0 0.0
    %449 = vmatpush1.msra.mxu0 0.0
    %450 = vmatprep.subr.mxu0 0.0
    %451 = vmatpush1.msra.mxu0 0.0
    %452 = vmatprep.subr.mxu0 0.0
    %453 = vmatpush1.msra.mxu0 0.0
    %454 = vmatprep.subr.mxu0 0.0
    %455 = vmatpush1.msra.mxu0 0.0
    %456 = vmatprep.subr.mxu0 0.0
    %457 = vmatpush1.msra.mxu0 0.0
    %458 = vmatprep.subr.mxu0 0.0
    %459 = vmatpush1.msra.mxu0 0.0
    %460 = vmatprep.subr.mxu0 0.0
    %461 = vmatpush1.msra.mxu0 0.0
    %462 = vmatprep.subr.mxu0 0.0
    %463 = vmatpush1.msra.mxu0 0.0
    %464 = vmatprep.subr.mxu0 0.0
    %465 = vmatpush1.msra.mxu0 0.0
    %466 = vmatprep.subr.mxu0 0.0
    %467 = vmatpush1.msra.mxu0 0.0
    %468 = vmatprep.subr.mxu0 0.0
    %469 = vmatpush1.msra.mxu0 0.0
    %470 = vmatprep.subr.mxu0 0.0
    %471 = vmatpush1.msra.mxu0 0.0
    %472 = vmatprep.subr.mxu0 0.0
    %473 = vmatpush1.msra.mxu0 0.0
    %474 = vmatprep.subr.mxu0 0.0
    %475 = vmatpush1.msra.mxu0 0.0
    %476 = vmatprep.subr.mxu0 0.0
    %477 = vmatpush1.msra.mxu0 0.0
    %478 = vmatprep.subr.mxu0 0.0
    %479 = vmatpush1.msra.mxu0 0.0
    %480 = vmatprep.subr.mxu0 0.0
    %481 = vmatpush1.msra.mxu0 0.0
    %482 = vmatprep.subr.mxu0 0.0
    %483 = vmatpush1.msra.mxu0 0.0
    %484 = vmatprep.subr.mxu0 0.0
    %485 = vmatpush1.msra.mxu0 0.0
    %486 = vmatprep.subr.mxu0 0.0
    %487 = vmatpush1.msra.mxu0 0.0
    %488 = vmatprep.subr.mxu0 0.0
    %489 = vmatpush1.msra.mxu0 0.0
    %490 = vmatprep.subr.mxu0 0.0
    %491 = vmatpush1.msra.mxu0 0.0
    %492 = vmatprep.subr.mxu0 0.0
    %493 = vmatpush1.msra.mxu0 0.0
    %494 = vmatprep.subr.mxu0 0.0
    %495 = vmatpush1.msra.mxu0 0.0
    %496 = vmatprep.subr.mxu0 0.0
    %497 = vmatpush1.msra.mxu0 0.0
    %498 = vmatprep.mubr.f32.mxu0 0.0
    %499 = vmatmul.mubr.f32.gmra.mrb[0].mxu0 %v432
    %v500 = vpop.f32.mrb[0].mxu0
    %v501 = vadd.f32 0.0, %v500
    %v502 = vpop.f32.mrb[0].mxu0
    %503 = vdwg.mxu0
    %v504 = vadd.f32 %v431, %v501
    %v505 = vxor.u32 %v504, 2147483648
    %v506 = vmul.f32 %v505, 1.442695
    %v507 = vpow.pop %v506
    %v508 = vadd.f32 %v507, 1.0
    %v509 = vrcp.pop %v508
    %v510 = vmul.f32 1.0, %v509
    %v511 = vtanh.pop %v504
    %v512 = vmul.f32 %v510, %v418
    %514 = vrot.lane.b32.xlu0 %v511, 64
    %v515 = vpop.permute.xlu0 %514
    %v517 = vmul.f32 %v510, %v515
    %519 = vrot.lane.b32.xlu0 %v517, 32
    %v520 = vpop.permute.xlu0 %519
    %v522 = vadd.f32 %v512, %v520
    %v523 = vtanh.pop %v522
    %525 = vrot.lane.b32.xlu0 %v523, 64
    %v526 = vpop.permute.xlu0 %525
    %v528 = vmul.f32 %v510, %v526
    %530 = vrot.lane.b32.xlu0 %v528, 32
    %v531 = vpop.permute.xlu0 %530
    %s533 = scalar_lea.vmem [#allocation3], 8
    %534 = vst.msk [vmem:[%s533] sm:$0xff] %vm44, %v531
    %s535 = scalar_lea.vmem [#allocation2], 16
    %v536 = vld [vmem:[%s535] sm:$0xff]
    %v537 = vsel %vm44, %v531, 0
    %539 = vmatprep.subr.mxu0 0.0
    %540 = vmatpush1.msra.mxu0 %v322
    %541 = vmatprep.subr.mxu0 0.0
    %542 = vmatpush1.msra.mxu0 %v323
    %543 = vmatprep.subr.mxu0 0.0
    %544 = vmatpush1.msra.mxu0 %v324
    %545 = vmatprep.subr.mxu0 0.0
    %546 = vmatpush1.msra.mxu0 %v325
    %547 = vmatprep.subr.mxu0 0.0
    %548 = vmatpush1.msra.mxu0 0.0
    %549 = vmatprep.subr.mxu0 0.0
    %550 = vmatpush1.msra.mxu0 0.0
    %551 = vmatprep.subr.mxu0 0.0
    %552 = vmatpush1.msra.mxu0 0.0
    %553 = vmatprep.subr.mxu0 0.0
    %554 = vmatpush1.msra.mxu0 0.0
    %555 = vmatprep.subr.mxu0 0.0
    %556 = vmatpush1.msra.mxu0 0.0
    %557 = vmatprep.subr.mxu0 0.0
    %558 = vmatpush1.msra.mxu0 0.0
    %559 = vmatprep.subr.mxu0 0.0
    %560 = vmatpush1.msra.mxu0 0.0
    %561 = vmatprep.subr.mxu0 0.0
    %562 = vmatpush1.msra.mxu0 0.0
    %563 = vmatprep.subr.mxu0 0.0
    %564 = vmatpush1.msra.mxu0 0.0
    %565 = vmatprep.subr.mxu0 0.0
    %566 = vmatpush1.msra.mxu0 0.0
    %567 = vmatprep.subr.mxu0 0.0
    %568 = vmatpush1.msra.mxu0 0.0
    %569 = vmatprep.subr.mxu0 0.0
    %570 = vmatpush1.msra.mxu0 0.0
    %571 = vmatprep.subr.mxu0 0.0
    %572 = vmatpush1.msra.mxu0 0.0
    %573 = vmatprep.subr.mxu0 0.0
    %574 = vmatpush1.msra.mxu0 0.0
    %575 = vmatprep.subr.mxu0 0.0
    %576 = vmatpush1.msra.mxu0 0.0
    %577 = vmatprep.subr.mxu0 0.0
    %578 = vmatpush1.msra.mxu0 0.0
    %579 = vmatprep.subr.mxu0 0.0
    %580 = vmatpush1.msra.mxu0 0.0
    %581 = vmatprep.subr.mxu0 0.0
    %582 = vmatpush1.msra.mxu0 0.0
    %583 = vmatprep.subr.mxu0 0.0
    %584 = vmatpush1.msra.mxu0 0.0
    %585 = vmatprep.subr.mxu0 0.0
    %586 = vmatpush1.msra.mxu0 0.0
    %587 = vmatprep.subr.mxu0 0.0
    %588 = vmatpush1.msra.mxu0 0.0
    %589 = vmatprep.subr.mxu0 0.0
    %590 = vmatpush1.msra.mxu0 0.0
    %591 = vmatprep.subr.mxu0 0.0
    %592 = vmatpush1.msra.mxu0 0.0
    %593 = vmatprep.subr.mxu0 0.0
    %594 = vmatpush1.msra.mxu0 0.0
    %595 = vmatprep.subr.mxu0 0.0
    %596 = vmatpush1.msra.mxu0 0.0
    %597 = vmatprep.subr.mxu0 0.0
    %598 = vmatpush1.msra.mxu0 0.0
    %599 = vmatprep.subr.mxu0 0.0
    %600 = vmatpush1.msra.mxu0 0.0
    %601 = vmatprep.subr.mxu0 0.0
    %602 = vmatpush1.msra.mxu0 0.0
    %603 = vmatprep.mubr.f32.mxu0 0.0
    %604 = vmatmul.mubr.f32.gmra.mrb[0].mxu0 %v537
    %v605 = vpop.f32.mrb[0].mxu0
    %v606 = vadd.f32 0.0, %v605
    %v607 = vpop.f32.mrb[0].mxu0
    %608 = vdwg.mxu0
    %v609 = vadd.f32 %v536, %v606
    %v610 = vxor.u32 %v609, 2147483648
    %v611 = vmul.f32 %v610, 1.442695
    %v612 = vpow.pop %v611
    %v613 = vadd.f32 %v612, 1.0
    %v614 = vrcp.pop %v613
    %v615 = vmul.f32 1.0, %v614
    %v616 = vtanh.pop %v609
    %v617 = vmul.f32 %v615, %v522
    %619 = vrot.lane.b32.xlu0 %v616, 64
    %v620 = vpop.permute.xlu0 %619
    %v622 = vmul.f32 %v615, %v620
    %624 = vrot.lane.b32.xlu0 %v622, 32
    %v625 = vpop.permute.xlu0 %624
    %v627 = vadd.f32 %v617, %v625
    %v628 = vtanh.pop %v627
    %630 = vrot.lane.b32.xlu0 %v628, 64
    %v631 = vpop.permute.xlu0 %630
    %v633 = vmul.f32 %v615, %v631
    %635 = vrot.lane.b32.xlu0 %v633, 32
    %v636 = vpop.permute.xlu0 %635
    %s638 = scalar_lea.vmem [#allocation3], 16
    %639 = vst.msk [vmem:[%s638] sm:$0xff] %vm44, %v636
    %s640 = scalar_lea.vmem [#allocation2], 24
    %v641 = vld [vmem:[%s640] sm:$0xff]
    %v642 = vsel %vm44, %v636, 0
    %644 = vmatprep.subr.mxu0 0.0
    %645 = vmatpush1.msra.mxu0 %v322
    %646 = vmatprep.subr.mxu0 0.0
    %647 = vmatpush1.msra.mxu0 %v323
    %648 = vmatprep.subr.mxu0 0.0
    %649 = vmatpush1.msra.mxu0 %v324
    %650 = vmatprep.subr.mxu0 0.0
    %651 = vmatpush1.msra.mxu0 %v325
    %652 = vmatprep.subr.mxu0 0.0
    %653 = vmatpush1.msra.mxu0 0.0
    %654 = vmatprep.subr.mxu0 0.0
    %655 = vmatpush1.msra.mxu0 0.0
    %656 = vmatprep.subr.mxu0 0.0
    %657 = vmatpush1.msra.mxu0 0.0
    %658 = vmatprep.subr.mxu0 0.0
    %659 = vmatpush1.msra.mxu0 0.0
    %660 = vmatprep.subr.mxu0 0.0
    %661 = vmatpush1.msra.mxu0 0.0
    %662 = vmatprep.subr.mxu0 0.0
    %663 = vmatpush1.msra.mxu0 0.0
    %664 = vmatprep.subr.mxu0 0.0
    %665 = vmatpush1.msra.mxu0 0.0
    %666 = vmatprep.subr.mxu0 0.0
    %667 = vmatpush1.msra.mxu0 0.0
    %668 = vmatprep.subr.mxu0 0.0
    %669 = vmatpush1.msra.mxu0 0.0
    %670 = vmatprep.subr.mxu0 0.0
    %671 = vmatpush1.msra.mxu0 0.0
    %672 = vmatprep.subr.mxu0 0.0
    %673 = vmatpush1.msra.mxu0 0.0
    %674 = vmatprep.subr.mxu0 0.0
    %675 = vmatpush1.msra.mxu0 0.0
    %676 = vmatprep.subr.mxu0 0.0
    %677 = vmatpush1.msra.mxu0 0.0
    %678 = vmatprep.subr.mxu0 0.0
    %679 = vmatpush1.msra.mxu0 0.0
    %680 = vmatprep.subr.mxu0 0.0
    %681 = vmatpush1.msra.mxu0 0.0
    %682 = vmatprep.subr.mxu0 0.0
    %683 = vmatpush1.msra.mxu0 0.0
    %684 = vmatprep.subr.mxu0 0.0
    %685 = vmatpush1.msra.mxu0 0.0
    %686 = vmatprep.subr.mxu0 0.0
    %687 = vmatpush1.msra.mxu0 0.0
    %688 = vmatprep.subr.mxu0 0.0
    %689 = vmatpush1.msra.mxu0 0.0
    %690 = vmatprep.subr.mxu0 0.0
    %691 = vmatpush1.msra.mxu0 0.0
    %692 = vmatprep.subr.mxu0 0.0
    %693 = vmatpush1.msra.mxu0 0.0
    %694 = vmatprep.subr.mxu0 0.0
    %695 = vmatpush1.msra.mxu0 0.0
    %696 = vmatprep.subr.mxu0 0.0
    %697 = vmatpush1.msra.mxu0 0.0
    %698 = vmatprep.subr.mxu0 0.0
    %699 = vmatpush1.msra.mxu0 0.0
    %700 = vmatprep.subr.mxu0 0.0
    %701 = vmatpush1.msra.mxu0 0.0
    %702 = vmatprep.subr.mxu0 0.0
    %703 = vmatpush1.msra.mxu0 0.0
    %704 = vmatprep.subr.mxu0 0.0
    %705 = vmatpush1.msra.mxu0 0.0
    %706 = vmatprep.subr.mxu0 0.0
    %707 = vmatpush1.msra.mxu0 0.0
    %708 = vmatprep.mubr.f32.mxu0 0.0
    %709 = vmatmul.mubr.f32.gmra.mrb[0].mxu0 %v642
    %v710 = vpop.f32.mrb[0].mxu0
    %v711 = vadd.f32 0.0, %v710
    %v712 = vpop.f32.mrb[0].mxu0
    %713 = vdwg.mxu0
    %v714 = vadd.f32 %v641, %v711
    %v715 = vxor.u32 %v714, 2147483648
    %v716 = vmul.f32 %v715, 1.442695
    %v717 = vpow.pop %v716
    %v718 = vadd.f32 %v717, 1.0
    %v719 = vrcp.pop %v718
    %v720 = vmul.f32 1.0, %v719
    %v721 = vtanh.pop %v714
    %v722 = vmul.f32 %v720, %v627
    %724 = vrot.lane.b32.xlu0 %v721, 64
    %v725 = vpop.permute.xlu0 %724
    %v727 = vmul.f32 %v720, %v725
    %729 = vrot.lane.b32.xlu0 %v727, 32
    %v730 = vpop.permute.xlu0 %729
    %v732 = vadd.f32 %v722, %v730
    %v733 = vtanh.pop %v732
    %735 = vrot.lane.b32.xlu0 %v733, 64
    %v736 = vpop.permute.xlu0 %735
    %v738 = vmul.f32 %v720, %v736
    %740 = vrot.lane.b32.xlu0 %v738, 32
    %v741 = vpop.permute.xlu0 %740
    %s743 = scalar_lea.vmem [#allocation3], 24
    %744 = vst.msk [vmem:[%s743] sm:$0xff] %vm44, %v741
    %s745 = scalar_lea.vmem [#allocation2], 32
    %v746 = vld [vmem:[%s745] sm:$0xff]
    %v747 = vsel %vm44, %v741, 0
    %749 = vmatprep.subr.mxu0 0.0
    %750 = vmatpush1.msra.mxu0 %v322
    %751 = vmatprep.subr.mxu0 0.0
    %752 = vmatpush1.msra.mxu0 %v323
    %753 = vmatprep.subr.mxu0 0.0
    %754 = vmatpush1.msra.mxu0 %v324
    %755 = vmatprep.subr.mxu0 0.0
    %756 = vmatpush1.msra.mxu0 %v325
    %757 = vmatprep.subr.mxu0 0.0
    %758 = vmatpush1.msra.mxu0 0.0
    %759 = vmatprep.subr.mxu0 0.0
    %760 = vmatpush1.msra.mxu0 0.0
    %761 = vmatprep.subr.mxu0 0.0
    %762 = vmatpush1.msra.mxu0 0.0
    %763 = vmatprep.subr.mxu0 0.0
    %764 = vmatpush1.msra.mxu0 0.0
    %765 = vmatprep.subr.mxu0 0.0
    %766 = vmatpush1.msra.mxu0 0.0
    %767 = vmatprep.subr.mxu0 0.0
    %768 = vmatpush1.msra.mxu0 0.0
    %769 = vmatprep.subr.mxu0 0.0
    %770 = vmatpush1.msra.mxu0 0.0
    %771 = vmatprep.subr.mxu0 0.0
    %772 = vmatpush1.msra.mxu0 0.0
    %773 = vmatprep.subr.mxu0 0.0
    %774 = vmatpush1.msra.mxu0 0.0
    %775 = vmatprep.subr.mxu0 0.0
    %776 = vmatpush1.msra.mxu0 0.0
    %777 = vmatprep.subr.mxu0 0.0
    %778 = vmatpush1.msra.mxu0 0.0
    %779 = vmatprep.subr.mxu0 0.0
    %780 = vmatpush1.msra.mxu0 0.0
    %781 = vmatprep.subr.mxu0 0.0
    %782 = vmatpush1.msra.mxu0 0.0
    %783 = vmatprep.subr.mxu0 0.0
    %784 = vmatpush1.msra.mxu0 0.0
    %785 = vmatprep.subr.mxu0 0.0
    %786 = vmatpush1.msra.mxu0 0.0
    %787 = vmatprep.subr.mxu0 0.0
    %788 = vmatpush1.msra.mxu0 0.0
    %789 = vmatprep.subr.mxu0 0.0
    %790 = vmatpush1.msra.mxu0 0.0
    %791 = vmatprep.subr.mxu0 0.0
    %792 = vmatpush1.msra.mxu0 0.0
    %793 = vmatprep.subr.mxu0 0.0
    %794 = vmatpush1.msra.mxu0 0.0
    %795 = vmatprep.subr.mxu0 0.0
    %796 = vmatpush1.msra.mxu0 0.0
    %797 = vmatprep.subr.mxu0 0.0
    %798 = vmatpush1.msra.mxu0 0.0
    %799 = vmatprep.subr.mxu0 0.0
    %800 = vmatpush1.msra.mxu0 0.0
    %801 = vmatprep.subr.mxu0 0.0
    %802 = vmatpush1.msra.mxu0 0.0
    %803 = vmatprep.subr.mxu0 0.0
    %804 = vmatpush1.msra.mxu0 0.0
    %805 = vmatprep.subr.mxu0 0.0
    %806 = vmatpush1.msra.mxu0 0.0
    %807 = vmatprep.subr.mxu0 0.0
    %808 = vmatpush1.msra.mxu0 0.0
    %809 = vmatprep.subr.mxu0 0.0
    %810 = vmatpush1.msra.mxu0 0.0
    %811 = vmatprep.subr.mxu0 0.0
    %812 = vmatpush1.msra.mxu0 0.0
    %813 = vmatprep.mubr.f32.mxu0 0.0
    %814 = vmatmul.mubr.f32.gmra.mrb[0].mxu0 %v747
    %v815 = vpop.f32.mrb[0].mxu0
    %v816 = vadd.f32 0.0, %v815
    %v817 = vpop.f32.mrb[0].mxu0
    %818 = vdwg.mxu0
    %v819 = vadd.f32 %v746, %v816
    %v820 = vxor.u32 %v819, 2147483648
    %v821 = vmul.f32 %v820, 1.442695
    %v822 = vpow.pop %v821
    %v823 = vadd.f32 %v822, 1.0
    %v824 = vrcp.pop %v823
    %v825 = vmul.f32 1.0, %v824
    %v826 = vtanh.pop %v819
    %v827 = vmul.f32 %v825, %v732
    %829 = vrot.lane.b32.xlu0 %v826, 64
    %v830 = vpop.permute.xlu0 %829
    %v832 = vmul.f32 %v825, %v830
    %834 = vrot.lane.b32.xlu0 %v832, 32
    %v835 = vpop.permute.xlu0 %834
    %v837 = vadd.f32 %v827, %v835
    %v838 = vtanh.pop %v837
    %840 = vrot.lane.b32.xlu0 %v838, 64
    %v841 = vpop.permute.xlu0 %840
    %v843 = vmul.f32 %v825, %v841
    %845 = vrot.lane.b32.xlu0 %v843, 32
    %v846 = vpop.permute.xlu0 %845
    %s848 = scalar_lea.vmem [#allocation3], 32
    %849 = vst.msk [vmem:[%s848] sm:$0xff] %vm44, %v846
    %s850 = scalar_lea.vmem [#allocation2], 40
    %v851 = vld [vmem:[%s850] sm:$0xff]
    %v852 = vsel %vm44, %v846, 0
    %854 = vmatprep.subr.mxu0 0.0
    %855 = vmatpush1.msra.mxu0 %v322
    %856 = vmatprep.subr.mxu0 0.0
    %857 = vmatpush1.msra.mxu0 %v323
    %858 = vmatprep.subr.mxu0 0.0
    %859 = vmatpush1.msra.mxu0 %v324
    %860 = vmatprep.subr.mxu0 0.0
    %861 = vmatpush1.msra.mxu0 %v325
    %862 = vmatprep.subr.mxu0 0.0
    %863 = vmatpush1.msra.mxu0 0.0
    %864 = vmatprep.subr.mxu0 0.0
    %865 = vmatpush1.msra.mxu0 0.0
    %866 = vmatprep.subr.mxu0 0.0
    %867 = vmatpush1.msra.mxu0 0.0
    %868 = vmatprep.subr.mxu0 0.0
    %869 = vmatpush1.msra.mxu0 0.0
    %870 = vmatprep.subr.mxu0 0.0
    %871 = vmatpush1.msra.mxu0 0.0
    %872 = vmatprep.subr.mxu0 0.0
    %873 = vmatpush1.msra.mxu0 0.0
    %874 = vmatprep.subr.mxu0 0.0
    %875 = vmatpush1.msra.mxu0 0.0
    %876 = vmatprep.subr.mxu0 0.0
    %877 = vmatpush1.msra.mxu0 0.0
    %878 = vmatprep.subr.mxu0 0.0
    %879 = vmatpush1.msra.mxu0 0.0
    %880 = vmatprep.subr.mxu0 0.0
    %881 = vmatpush1.msra.mxu0 0.0
    %882 = vmatprep.subr.mxu0 0.0
    %883 = vmatpush1.msra.mxu0 0.0
    %884 = vmatprep.subr.mxu0 0.0
    %885 = vmatpush1.msra.mxu0 0.0
    %886 = vmatprep.subr.mxu0 0.0
    %887 = vmatpush1.msra.mxu0 0.0
    %888 = vmatprep.subr.mxu0 0.0
    %889 = vmatpush1.msra.mxu0 0.0
    %890 = vmatprep.subr.mxu0 0.0
    %891 = vmatpush1.msra.mxu0 0.0
    %892 = vmatprep.subr.mxu0 0.0
    %893 = vmatpush1.msra.mxu0 0.0
    %894 = vmatprep.subr.mxu0 0.0
    %895 = vmatpush1.msra.mxu0 0.0
    %896 = vmatprep.subr.mxu0 0.0
    %897 = vmatpush1.msra.mxu0 0.0
    %898 = vmatprep.subr.mxu0 0.0
    %899 = vmatpush1.msra.mxu0 0.0
    %900 = vmatprep.subr.mxu0 0.0
    %901 = vmatpush1.msra.mxu0 0.0
    %902 = vmatprep.subr.mxu0 0.0
    %903 = vmatpush1.msra.mxu0 0.0
    %904 = vmatprep.subr.mxu0 0.0
    %905 = vmatpush1.msra.mxu0 0.0
    %906 = vmatprep.subr.mxu0 0.0
    %907 = vmatpush1.msra.mxu0 0.0
    %908 = vmatprep.subr.mxu0 0.0
    %909 = vmatpush1.msra.mxu0 0.0
    %910 = vmatprep.subr.mxu0 0.0
    %911 = vmatpush1.msra.mxu0 0.0
    %912 = vmatprep.subr.mxu0 0.0
    %913 = vmatpush1.msra.mxu0 0.0
    %914 = vmatprep.subr.mxu0 0.0
    %915 = vmatpush1.msra.mxu0 0.0
    %916 = vmatprep.subr.mxu0 0.0
    %917 = vmatpush1.msra.mxu0 0.0
    %918 = vmatprep.mubr.f32.mxu0 0.0
    %919 = vmatmul.mubr.f32.gmra.mrb[0].mxu0 %v852
    %v920 = vpop.f32.mrb[0].mxu0
    %v921 = vadd.f32 0.0, %v920
    %v922 = vpop.f32.mrb[0].mxu0
    %923 = vdwg.mxu0
    %v924 = vadd.f32 %v851, %v921
    %v925 = vxor.u32 %v924, 2147483648
    %v926 = vmul.f32 %v925, 1.442695
    %v927 = vpow.pop %v926
    %v928 = vadd.f32 %v927, 1.0
    %v929 = vrcp.pop %v928
    %v930 = vmul.f32 1.0, %v929
    %v931 = vtanh.pop %v924
    %v932 = vmul.f32 %v930, %v837
    %934 = vrot.lane.b32.xlu0 %v931, 64
    %v935 = vpop.permute.xlu0 %934
    %v937 = vmul.f32 %v930, %v935
    %939 = vrot.lane.b32.xlu0 %v937, 32
    %v940 = vpop.permute.xlu0 %939
    %v942 = vadd.f32 %v932, %v940
    %v943 = vtanh.pop %v942
    %945 = vrot.lane.b32.xlu0 %v943, 64
    %v946 = vpop.permute.xlu0 %945
    %v948 = vmul.f32 %v930, %v946
    %950 = vrot.lane.b32.xlu0 %v948, 32
    %v951 = vpop.permute.xlu0 %950
    %s953 = scalar_lea.vmem [#allocation3], 40
    %954 = vst.msk [vmem:[%s953] sm:$0xff] %vm44, %v951
    %s955 = scalar_lea.vmem [#allocation2], 48
    %v956 = vld [vmem:[%s955] sm:$0xff]
    %v957 = vsel %vm44, %v951, 0
    %959 = vmatprep.subr.mxu0 0.0
    %960 = vmatpush1.msra.mxu0 %v322
    %961 = vmatprep.subr.mxu0 0.0
    %962 = vmatpush1.msra.mxu0 %v323
    %963 = vmatprep.subr.mxu0 0.0
    %964 = vmatpush1.msra.mxu0 %v324
    %965 = vmatprep.subr.mxu0 0.0
    %966 = vmatpush1.msra.mxu0 %v325
    %967 = vmatprep.subr.mxu0 0.0
    %968 = vmatpush1.msra.mxu0 0.0
    %969 = vmatprep.subr.mxu0 0.0
    %970 = vmatpush1.msra.mxu0 0.0
    %971 = vmatprep.subr.mxu0 0.0
    %972 = vmatpush1.msra.mxu0 0.0
    %973 = vmatprep.subr.mxu0 0.0
    %974 = vmatpush1.msra.mxu0 0.0
    %975 = vmatprep.subr.mxu0 0.0
    %976 = vmatpush1.msra.mxu0 0.0
    %977 = vmatprep.subr.mxu0 0.0
    %978 = vmatpush1.msra.mxu0 0.0
    %979 = vmatprep.subr.mxu0 0.0
    %980 = vmatpush1.msra.mxu0 0.0
    %981 = vmatprep.subr.mxu0 0.0
    %982 = vmatpush1.msra.mxu0 0.0
    %983 = vmatprep.subr.mxu0 0.0
    %984 = vmatpush1.msra.mxu0 0.0
    %985 = vmatprep.subr.mxu0 0.0
    %986 = vmatpush1.msra.mxu0 0.0
    %987 = vmatprep.subr.mxu0 0.0
    %988 = vmatpush1.msra.mxu0 0.0
    %989 = vmatprep.subr.mxu0 0.0
    %990 = vmatpush1.msra.mxu0 0.0
    %991 = vmatprep.subr.mxu0 0.0
    %992 = vmatpush1.msra.mxu0 0.0
    %993 = vmatprep.subr.mxu0 0.0
    %994 = vmatpush1.msra.mxu0 0.0
    %995 = vmatprep.subr.mxu0 0.0
    %996 = vmatpush1.msra.mxu0 0.0
    %997 = vmatprep.subr.mxu0 0.0
    %998 = vmatpush1.msra.mxu0 0.0
    %999 = vmatprep.subr.mxu0 0.0
    %1000 = vmatpush1.msra.mxu0 0.0
    %1001 = vmatprep.subr.mxu0 0.0
    %1002 = vmatpush1.msra.mxu0 0.0
    %1003 = vmatprep.subr.mxu0 0.0
    %1004 = vmatpush1.msra.mxu0 0.0
    %1005 = vmatprep.subr.mxu0 0.0
    %1006 = vmatpush1.msra.mxu0 0.0
    %1007 = vmatprep.subr.mxu0 0.0
    %1008 = vmatpush1.msra.mxu0 0.0
    %1009 = vmatprep.subr.mxu0 0.0
    %1010 = vmatpush1.msra.mxu0 0.0
    %1011 = vmatprep.subr.mxu0 0.0
    %1012 = vmatpush1.msra.mxu0 0.0
    %1013 = vmatprep.subr.mxu0 0.0
    %1014 = vmatpush1.msra.mxu0 0.0
    %1015 = vmatprep.subr.mxu0 0.0
    %1016 = vmatpush1.msra.mxu0 0.0
    %1017 = vmatprep.subr.mxu0 0.0
    %1018 = vmatpush1.msra.mxu0 0.0
    %1019 = vmatprep.subr.mxu0 0.0
    %1020 = vmatpush1.msra.mxu0 0.0
    %1021 = vmatprep.subr.mxu0 0.0
    %1022 = vmatpush1.msra.mxu0 0.0
    %1023 = vmatprep.mubr.f32.mxu0 0.0
    %1024 = vmatmul.mubr.f32.gmra.mrb[0].mxu0 %v957
    %v1025 = vpop.f32.mrb[0].mxu0
    %v1026 = vadd.f32 0.0, %v1025
    %v1027 = vpop.f32.mrb[0].mxu0
    %1028 = vdwg.mxu0
    %v1029 = vadd.f32 %v956, %v1026
    %v1030 = vxor.u32 %v1029, 2147483648
    %v1031 = vmul.f32 %v1030, 1.442695
    %v1032 = vpow.pop %v1031
    %v1033 = vadd.f32 %v1032, 1.0
    %v1034 = vrcp.pop %v1033
    %v1035 = vmul.f32 1.0, %v1034
    %v1036 = vtanh.pop %v1029
    %v1037 = vmul.f32 %v1035, %v942
    %1039 = vrot.lane.b32.xlu0 %v1036, 64
    %v1040 = vpop.permute.xlu0 %1039
    %v1042 = vmul.f32 %v1035, %v1040
    %1044 = vrot.lane.b32.xlu0 %v1042, 32
    %v1045 = vpop.permute.xlu0 %1044
    %v1047 = vadd.f32 %v1037, %v1045
    %v1048 = vtanh.pop %v1047
    %1050 = vrot.lane.b32.xlu0 %v1048, 64
    %v1051 = vpop.permute.xlu0 %1050
    %v1053 = vmul.f32 %v1035, %v1051
    %1055 = vrot.lane.b32.xlu0 %v1053, 32
    %v1056 = vpop.permute.xlu0 %1055
    %s1058 = scalar_lea.vmem [#allocation3], 48
    %1059 = vst.msk [vmem:[%s1058] sm:$0xff] %vm44, %v1056
    %s1060 = scalar_lea.vmem [#allocation2], 56
    %v1061 = vld [vmem:[%s1060] sm:$0xff]
    %v1062 = vsel %vm44, %v1056, 0
    %1064 = vmatprep.subr.mxu0 0.0
    %1065 = vmatpush1.msra.mxu0 %v322
    %1066 = vmatprep.subr.mxu0 0.0
    %1067 = vmatpush1.msra.mxu0 %v323
    %1068 = vmatprep.subr.mxu0 0.0
    %1069 = vmatpush1.msra.mxu0 %v324
    %1070 = vmatprep.subr.mxu0 0.0
    %1071 = vmatpush1.msra.mxu0 %v325
    %1072 = vmatprep.subr.mxu0 0.0
    %1073 = vmatpush1.msra.mxu0 0.0
    %1074 = vmatprep.subr.mxu0 0.0
    %1075 = vmatpush1.msra.mxu0 0.0
    %1076 = vmatprep.subr.mxu0 0.0
    %1077 = vmatpush1.msra.mxu0 0.0
    %1078 = vmatprep.subr.mxu0 0.0
    %1079 = vmatpush1.msra.mxu0 0.0
    %1080 = vmatprep.subr.mxu0 0.0
    %1081 = vmatpush1.msra.mxu0 0.0
    %1082 = vmatprep.subr.mxu0 0.0
    %1083 = vmatpush1.msra.mxu0 0.0
    %1084 = vmatprep.subr.mxu0 0.0
    %1085 = vmatpush1.msra.mxu0 0.0
    %1086 = vmatprep.subr.mxu0 0.0
    %1087 = vmatpush1.msra.mxu0 0.0
    %1088 = vmatprep.subr.mxu0 0.0
    %1089 = vmatpush1.msra.mxu0 0.0
    %1090 = vmatprep.subr.mxu0 0.0
    %1091 = vmatpush1.msra.mxu0 0.0
    %1092 = vmatprep.subr.mxu0 0.0
    %1093 = vmatpush1.msra.mxu0 0.0
    %1094 = vmatprep.subr.mxu0 0.0
    %1095 = vmatpush1.msra.mxu0 0.0
    %1096 = vmatprep.subr.mxu0 0.0
    %1097 = vmatpush1.msra.mxu0 0.0
    %1098 = vmatprep.subr.mxu0 0.0
    %1099 = vmatpush1.msra.mxu0 0.0
    %1100 = vmatprep.subr.mxu0 0.0
    %1101 = vmatpush1.msra.mxu0 0.0
    %1102 = vmatprep.subr.mxu0 0.0
    %1103 = vmatpush1.msra.mxu0 0.0
    %1104 = vmatprep.subr.mxu0 0.0
    %1105 = vmatpush1.msra.mxu0 0.0
    %1106 = vmatprep.subr.mxu0 0.0
    %1107 = vmatpush1.msra.mxu0 0.0
    %1108 = vmatprep.subr.mxu0 0.0
    %1109 = vmatpush1.msra.mxu0 0.0
    %1110 = vmatprep.subr.mxu0 0.0
    %1111 = vmatpush1.msra.mxu0 0.0
    %1112 = vmatprep.subr.mxu0 0.0
    %1113 = vmatpush1.msra.mxu0 0.0
    %1114 = vmatprep.subr.mxu0 0.0
    %1115 = vmatpush1.msra.mxu0 0.0
    %1116 = vmatprep.subr.mxu0 0.0
    %1117 = vmatpush1.msra.mxu0 0.0
    %1118 = vmatprep.subr.mxu0 0.0
    %1119 = vmatpush1.msra.mxu0 0.0
    %1120 = vmatprep.subr.mxu0 0.0
    %1121 = vmatpush1.msra.mxu0 0.0
    %1122 = vmatprep.subr.mxu0 0.0
    %1123 = vmatpush1.msra.mxu0 0.0
    %1124 = vmatprep.subr.mxu0 0.0
    %1125 = vmatpush1.msra.mxu0 0.0
    %1126 = vmatprep.subr.mxu0 0.0
    %1127 = vmatpush1.msra.mxu0 0.0
    %1128 = vmatprep.mubr.f32.mxu0 0.0
    %1129 = vmatmul.mubr.f32.gmra.mrb[0].mxu0 %v1062
    %v1130 = vpop.f32.mrb[0].mxu0
    %v1131 = vadd.f32 0.0, %v1130
    %v1132 = vpop.f32.mrb[0].mxu0
    %1133 = vdwg.mxu0
    %v1134 = vadd.f32 %v1061, %v1131
    %v1135 = vxor.u32 %v1134, 2147483648
    %v1136 = vmul.f32 %v1135, 1.442695
    %v1137 = vpow.pop %v1136
    %v1138 = vadd.f32 %v1137, 1.0
    %v1139 = vrcp.pop %v1138
    %v1140 = vmul.f32 1.0, %v1139
    %v1141 = vtanh.pop %v1134
    %v1142 = vmul.f32 %v1140, %v1047
    %1144 = vrot.lane.b32.xlu0 %v1141, 64
    %v1145 = vpop.permute.xlu0 %1144
    %v1147 = vmul.f32 %v1140, %v1145
    %1149 = vrot.lane.b32.xlu0 %v1147, 32
    %v1150 = vpop.permute.xlu0 %1149
    %v1152 = vadd.f32 %v1142, %v1150
    %v1153 = vtanh.pop %v1152
    %1155 = vrot.lane.b32.xlu0 %v1153, 64
    %v1156 = vpop.permute.xlu0 %1155
    %v1158 = vmul.f32 %v1140, %v1156
    %1160 = vrot.lane.b32.xlu0 %v1158, 32
    %v1161 = vpop.permute.xlu0 %1160
    %s1163 = scalar_lea.vmem [#allocation3], 56
    %1164 = vst.msk [vmem:[%s1163] sm:$0xff] %vm44, %v1161
    %1165 = vst.msk [vmem:[#allocation4] sm:$0xff] %vm44, %v1161
    %1167 = vrot.lane.b32.xlu0 %v1152, 96
    %v1168 = vpop.permute.xlu0 %1167
    %1170 = vst.msk [vmem:[#allocation6] sm:$0xff] %vm44, %v1168
    %v1171 = vld [vmem:[#allocation3] sm:$0xff]
    %v1172 = vld [vmem:[#allocation3 + $0x8] sm:$0xff]
    %v1173 = vld [vmem:[#allocation3 + $0x10] sm:$0xff]
    %v1174 = vld [vmem:[#allocation3 + $0x18] sm:$0xff]
    %v1175 = vld [vmem:[#allocation3 + $0x20] sm:$0xff]
    %v1176 = vld [vmem:[#allocation3 + $0x28] sm:$0xff]
    %v1177 = vld [vmem:[#allocation3 + $0x30] sm:$0xff]
    %v1178 = vld [vmem:[#allocation3 + $0x38] sm:$0xff]
    %v1179 = vld [vmem:[%s5] sm:$0xff]
    %v1180 = vld [vmem:[%s5 + $0x8] sm:$0xff]
    %v1181 = vld [vmem:[%s5 + $0x10] sm:$0xff]
    %v1182 = vld [vmem:[%s5 + $0x18] sm:$0xff]
    %v1183 = vld [vmem:[%s6] sm:$0x1]
    %v1185 = vlaneseq
    %v1186 = vshrl.u32 %v1185, 7
    %v1187 = vsub.s32 0, %v1186
    %v1188 = vrot.slane %v1183, %v1187
    %v1191 = vsel %vm44, %v1171, 0
    %v1194 = vsel %vm44, %v1172, 0
    %v1197 = vsel %vm44, %v1173, 0
    %v1200 = vsel %vm44, %v1174, 0
    %v1203 = vsel %vm44, %v1175, 0
    %v1206 = vsel %vm44, %v1176, 0
    %v1209 = vsel %vm44, %v1177, 0
    %v1212 = vsel %vm44, %v1178, 0
    %1214 = vmatprep.subr.mxu0 0.0
    %1215 = vmatpush1.msra.mxu0 %v1179
    %1216 = vmatprep.subr.mxu0 0.0
    %1217 = vmatpush1.msra.mxu0 %v1180
    %1218 = vmatprep.subr.mxu0 0.0
    %1219 = vmatpush1.msra.mxu0 %v1181
    %1220 = vmatprep.subr.mxu0 0.0
    %1221 = vmatpush1.msra.mxu0 %v1182
    %1222 = vmatprep.subr.mxu0 0.0
    %1223 = vmatpush1.msra.mxu0 0.0
    %1224 = vmatprep.subr.mxu0 0.0
    %1225 = vmatpush1.msra.mxu0 0.0
    %1226 = vmatprep.subr.mxu0 0.0
    %1227 = vmatpush1.msra.mxu0 0.0
    %1228 = vmatprep.subr.mxu0 0.0
    %1229 = vmatpush1.msra.mxu0 0.0
    %1230 = vmatprep.subr.mxu0 0.0
    %1231 = vmatpush1.msra.mxu0 0.0
    %1232 = vmatprep.subr.mxu0 0.0
    %1233 = vmatpush1.msra.mxu0 0.0
    %1234 = vmatprep.subr.mxu0 0.0
    %1235 = vmatpush1.msra.mxu0 0.0
    %1236 = vmatprep.subr.mxu0 0.0
    %1237 = vmatpush1.msra.mxu0 0.0
    %1238 = vmatprep.subr.mxu0 0.0
    %1239 = vmatpush1.msra.mxu0 0.0
    %1240 = vmatprep.subr.mxu0 0.0
    %1241 = vmatpush1.msra.mxu0 0.0
    %1242 = vmatprep.subr.mxu0 0.0
    %1243 = vmatpush1.msra.mxu0 0.0
    %1244 = vmatprep.subr.mxu0 0.0
    %1245 = vmatpush1.msra.mxu0 0.0
    %1246 = vmatprep.subr.mxu0 0.0
    %1247 = vmatpush1.msra.mxu0 0.0
    %1248 = vmatprep.subr.mxu0 0.0
    %1249 = vmatpush1.msra.mxu0 0.0
    %1250 = vmatprep.subr.mxu0 0.0
    %1251 = vmatpush1.msra.mxu0 0.0
    %1252 = vmatprep.subr.mxu0 0.0
    %1253 = vmatpush1.msra.mxu0 0.0
    %1254 = vmatprep.subr.mxu0 0.0
    %1255 = vmatpush1.msra.mxu0 0.0
    %1256 = vmatprep.subr.mxu0 0.0
    %1257 = vmatpush1.msra.mxu0 0.0
    %1258 = vmatprep.subr.mxu0 0.0
    %1259 = vmatpush1.msra.mxu0 0.0
    %1260 = vmatprep.subr.mxu0 0.0
    %1261 = vmatpush1.msra.mxu0 0.0
    %1262 = vmatprep.subr.mxu0 0.0
    %1263 = vmatpush1.msra.mxu0 0.0
    %1264 = vmatprep.subr.mxu0 0.0
    %1265 = vmatpush1.msra.mxu0 0.0
    %1266 = vmatprep.subr.mxu0 0.0
    %1267 = vmatpush1.msra.mxu0 0.0
    %1268 = vmatprep.subr.mxu0 0.0
    %1269 = vmatpush1.msra.mxu0 0.0
    %1270 = vmatprep.subr.mxu0 0.0
    %1271 = vmatpush1.msra.mxu0 0.0
    %1272 = vmatprep.subr.mxu0 0.0
    %1273 = vmatpush1.msra.mxu0 0.0
    %1274 = vmatprep.subr.mxu0 0.0
    %1275 = vmatpush1.msra.mxu0 0.0
    %1276 = vmatprep.subr.mxu0 0.0
    %1277 = vmatpush1.msra.mxu0 0.0
    %1278 = vmatprep.mubr.f32.mxu0 0.0
    %1279 = vmatmul.mubr.f32.gmra.mrb[0].mxu0 %v1191
    %v1280 = vpop.f32.mrb[0].mxu0
    %v1281 = vadd.f32 %v1188, %v1280
    %v1282 = vpop.f32.mrb[0].mxu0
    %1283 = vmatprep.mubr.f32.mxu0 0.0
    %1284 = vmatmul.mubr.f32.gmra.mrb[0].mxu0 %v1194
    %v1285 = vpop.f32.mrb[0].mxu0
    %v1286 = vadd.f32 %v1188, %v1285
    %v1287 = vpop.f32.mrb[0].mxu0
    %1288 = vmatprep.mubr.f32.mxu0 0.0
    %1289 = vmatmul.mubr.f32.gmra.mrb[0].mxu0 %v1197
    %v1290 = vpop.f32.mrb[0].mxu0
    %v1291 = vadd.f32 %v1188, %v1290
    %v1292 = vpop.f32.mrb[0].mxu0
    %1293 = vmatprep.mubr.f32.mxu0 0.0
    %1294 = vmatmul.mubr.f32.gmra.mrb[0].mxu0 %v1200
    %v1295 = vpop.f32.mrb[0].mxu0
    %v1296 = vadd.f32 %v1188, %v1295
    %v1297 = vpop.f32.mrb[0].mxu0
    %1298 = vmatprep.mubr.f32.mxu0 0.0
    %1299 = vmatmul.mubr.f32.gmra.mrb[0].mxu0 %v1203
    %v1300 = vpop.f32.mrb[0].mxu0
    %v1301 = vadd.f32 %v1188, %v1300
    %v1302 = vpop.f32.mrb[0].mxu0
    %1303 = vmatprep.mubr.f32.mxu0 0.0
    %1304 = vmatmul.mubr.f32.gmra.mrb[0].mxu0 %v1206
    %v1305 = vpop.f32.mrb[0].mxu0
    %v1306 = vadd.f32 %v1188, %v1305
    %v1307 = vpop.f32.mrb[0].mxu0
    %1308 = vmatprep.mubr.f32.mxu0 0.0
    %1309 = vmatmul.mubr.f32.gmra.mrb[0].mxu0 %v1209
    %v1310 = vpop.f32.mrb[0].mxu0
    %v1311 = vadd.f32 %v1188, %v1310
    %v1312 = vpop.f32.mrb[0].mxu0
    %1313 = vmatprep.mubr.f32.mxu0 0.0
    %1314 = vmatmul.mubr.f32.gmra.mrb[0].mxu0 %v1212
    %v1315 = vpop.f32.mrb[0].mxu0
    %v1316 = vadd.f32 %v1188, %v1315
    %v1317 = vpop.f32.mrb[0].mxu0
    %1318 = vdwg.mxu0
    %1319 = vst.msk [vmem:[%s7] sm:$0xff] %vm184, %v1281
    %1320 = vst.msk [vmem:[%s7 + $0x8] sm:$0xff] %vm184, %v1286
    %1321 = vst.msk [vmem:[%s7 + $0x10] sm:$0xff] %vm184, %v1291
    %1322 = vst.msk [vmem:[%s7 + $0x18] sm:$0xff] %vm184, %v1296
    %1323 = vst.msk [vmem:[%s7 + $0x20] sm:$0xff] %vm184, %v1301
    %1324 = vst.msk [vmem:[%s7 + $0x28] sm:$0xff] %vm184, %v1306
    %1325 = vst.msk [vmem:[%s7 + $0x30] sm:$0xff] %vm184, %v1311
    %1326 = vst.msk [vmem:[%s7 + $0x38] sm:$0xff] %vm184, %v1316
    // Predicated region
    $region30: #{tpu_custom_call.1} parent=1 // pred_check
      _
    $region31: #{tpu_custom_call.1} parent=1 // pred_check_branch
      %1328 = sbr.rel (0) target = $region33
    $region32: #{tpu_custom_call.1} parent=1 // pred_region
      _
    $region33: #{tpu_custom_call.1} parent=1 // pred_fallthru
      _
    // Predicated region
    $region34: #{tpu_custom_call.1} parent=1 // pred_check
      _
    $region35: #{tpu_custom_call.1} parent=1 // pred_check_branch
      %1330 = sbr.rel (0) target = $region37
    $region36: #{tpu_custom_call.1} parent=1 // pred_region
      %s1332 = ssub.s32 128, 128
      %1333 = vsyncadd [#allocation5], %s1332
      %s1335 = sshll.u32 [#allocation4], 4
      %s1336 = int_to_ptr.vmem [resolvable:$true] %s1335
      %1338 = dma.vmem_to_hbm [thread:$0]  %s1336, 128, %s8, [#allocation5]
    $region37: #{tpu_custom_call.1} parent=1 // pred_fallthru
      _
    // Predicated region
    $region38: #{tpu_custom_call.1} parent=1 // pred_check
      _
    $region39: #{tpu_custom_call.1} parent=1 // pred_check_branch
      %1340 = sbr.rel (0) target = $region41
    $region40: #{tpu_custom_call.1} parent=1 // pred_region
      %s1342 = ssub.s32 128, 128
      %1343 = vsyncadd [#allocation7], %s1342
      %s1345 = sshll.u32 [#allocation6], 4
      %s1346 = int_to_ptr.vmem [resolvable:$true] %s1345
      %1348 = dma.vmem_to_hbm [thread:$0]  %s1346, 128, %s9, [#allocation7]
    $region41: #{tpu_custom_call.1} parent=1 // pred_fallthru
      _
    // Predicated region
    $region42: #{tpu_custom_call.1} parent=1 // pred_check
      _
    $region43: #{tpu_custom_call.1} parent=1 // pred_check_branch
      %1350 = sbr.rel (0) target = $region45
    $region44: #{tpu_custom_call.1} parent=1 // pred_region
      _
    $region45: #{tpu_custom_call.1} parent=1 // pred_fallthru
      _
    // Predicated region
    $region46: #{tpu_custom_call.1} parent=1 // pred_check
      _
    $region47: #{tpu_custom_call.1} parent=1 // pred_check_branch
      %1352 = sbr.rel (0) target = $region49
    $region48: #{tpu_custom_call.1} parent=1 // pred_region
      %1353 = dma.done [#allocation5], 128
    $region49: #{tpu_custom_call.1} parent=1 // pred_fallthru
      _
    // Predicated region
    $region50: #{tpu_custom_call.1} parent=1 // pred_check
      _
    $region51: #{tpu_custom_call.1} parent=1 // pred_check_branch
      %1355 = sbr.rel (0) target = $region53
    $region52: #{tpu_custom_call.1} parent=1 // pred_region
      %1356 = dma.done [#allocation7], 128
    $region53: #{tpu_custom_call.1} parent=1 // pred_fallthru
      _
    %1357 = vsyncpa [#allocation5], 1
    %1358 = vsyncpa [#allocation7], 1

</llo_original>
